<compile_context>
chip_gen: v5e
topology: v5e:2x2
jax: 0.10.0
libtpu: 0.0.40
codegen_flags: <defaults>
</compile_context>

<pallas_src>
from types import SimpleNamespace

import jax
import jax.numpy as jnp
from jax import lax
from jax.experimental import pallas as pl
from jax.experimental.pallas import tpu as pltpu


def _gram_t(x):
    # x @ x.T without materializing a transpose: contract dim 1 of both operands.
    return lax.dot_general(x, x, (((1,), (1,)), ((), ())),
                           preferred_element_type=jnp.float32)


# ----------------------------------------------------------------------------
# Fused QNetGlobal forward (appnp backbone), single pallas_call
# ----------------------------------------------------------------------------
def qnet_global_forward(Z, A, params, config):
    B, N, D = Z.shape
    H = params["gl1_w"].shape[0]
    Dh = params["w1"].shape[1]
    Do = params["w2"].shape[1]
    K = int(config.gnn_K)
    alpha = float(config.gnn_alpha)
    r_init = float(config.init_adj_ratio)
    r_adj = float(config.adj_ratio)

    # Split learner-2 weight into halves acting on Z' and Z'' so the kernel
    # never materializes the feature-dim concat of (Z', Z'').
    gl2_wl = params["gl2_w"][:, :Do]
    gl2_wr = params["gl2_w"][:, Do:]

    def kernel(z_ref, a_ref, gl1_ref, gl2l_ref, gl2r_ref,
               w1_ref, b1_ref, w2_ref, b2_ref,
               ag_ref, zg_ref):
        z = z_ref[0]                        # (N, D)
        a = a_ref[0]                        # (N, N)

        # ---- GlobalGraphLearner 1: one lane-wide gram over all H heads ----
        blocks1 = []
        for h in range(H):                  # H small & static (elementwise only)
            zh = z * gl1_ref[h:h + 1, :]
            s = jnp.sum(zh * zh, axis=-1, keepdims=True)
            # x * rsqrt(max(s,1e-24)) == x / max(||x||, 1e-12)  (F.normalize)
            blocks1.append(zh * lax.rsqrt(jnp.maximum(s, 1e-24)))
        zcat1 = jnp.concatenate(blocks1, axis=-1)        # (N, H*D)
        att1 = jnp.maximum(_gram_t(zcat1) * (1.0 / H), 0.0)   # head-mean + mask
        a_prime = (1.0 - r_init) * att1 + r_init * a

        # ---- Dense_APPNP_Net MLP: computed ONCE, reused for both chains ----
        h1 = jnp.dot(z, w1_ref[...], preferred_element_type=jnp.float32) + b1_ref[...]
        h1 = jnp.maximum(h1, 0.0)
        hm = jnp.dot(h1, w2_ref[...], preferred_element_type=jnp.float32) + b2_ref[...]

        # ---- DenseAPPNP: both K-step chains fused via block-diag adjacency ----
        zero_nn = jnp.zeros((N, N), jnp.float32)
        adj_blk = jnp.concatenate(
            [jnp.concatenate([a_prime * (1.0 - alpha), zero_nn], axis=1),
             jnp.concatenate([zero_nn, a * (1.0 - alpha)], axis=1)],
            axis=0)                                      # (2N, 2N)
        x_blk = jnp.concatenate([hm, hm], axis=0)        # (2N, Do)
        ah_blk = alpha * x_blk                           # hoisted residual term
        for _ in range(K):                               # K static, unrolled
            # keep "adj @ x + ah" form (MRB in-place accumulate path on v7x)
            x_blk = jnp.dot(adj_blk, x_blk,
                            preferred_element_type=jnp.float32) + ah_blk
        x_blk = x_blk * (1.0 / K)
        xp = x_blk[:N]                                   # Z'
        xpp = x_blk[N:]                                  # Z''

        # ---- GlobalGraphLearner 2: one lane-dense gram over all 2H blocks ----
        blocks2 = []
        for h in range(H):
            zl = xp * gl2l_ref[h:h + 1, :]
            zr = xpp * gl2r_ref[h:h + 1, :]
            s = (jnp.sum(zl * zl, axis=-1, keepdims=True)
                 + jnp.sum(zr * zr, axis=-1, keepdims=True))   # joint L2 norm
            inv = lax.rsqrt(jnp.maximum(s, 1e-24))
            blocks2.append(zl * inv)
            blocks2.append(zr * inv)
        zcat2 = jnp.concatenate(blocks2, axis=-1)        # (N, 2H*Do) = (16,128)
        att2 = jnp.maximum(_gram_t(zcat2) * (1.0 / H), 0.0)
        a_dprime = (1.0 - r_init) * att2 + r_init * a

        # ---- final blends written directly ----
        ag_ref[0] = (1.0 - r_adj) * a_prime + r_adj * a_dprime
        zg_ref[0] = 0.5 * (xp + xpp)

    return pl.pallas_call(
        kernel,
        out_shape=(jax.ShapeDtypeStruct((B, N, N), jnp.float32),
                   jax.ShapeDtypeStruct((B, N, Do), jnp.float32)),
        grid=(B,),
        in_specs=[
            pl.BlockSpec((1, N, D), lambda b: (b, 0, 0)),   # Z
            pl.BlockSpec((1, N, N), lambda b: (b, 0, 0)),   # A
            pl.BlockSpec((H, D), lambda b: (0, 0)),         # gl1_w
            pl.BlockSpec((H, Do), lambda b: (0, 0)),        # gl2_w left half
            pl.BlockSpec((H, Do), lambda b: (0, 0)),        # gl2_w right half
            pl.BlockSpec((D, Dh), lambda b: (0, 0)),        # w1
            pl.BlockSpec((1, Dh), lambda b: (0, 0)),        # b1
            pl.BlockSpec((Dh, Do), lambda b: (0, 0)),       # w2
            pl.BlockSpec((1, Do), lambda b: (0, 0)),        # b2
        ],
        out_specs=(pl.BlockSpec((1, N, N), lambda b: (b, 0, 0)),
                   pl.BlockSpec((1, N, Do), lambda b: (b, 0, 0))),
        compiler_params=pltpu.CompilerParams(
            dimension_semantics=("parallel",),      # v7x: one batch elem per TC
            vmem_limit_bytes=32 * 1024 * 1024),     # scaling guard; KBs at N=16
    )(Z, A, params["gl1_w"], gl2_wl, gl2_wr,
      params["w1"], params["b1"], params["w2"], params["b2"])


# ----------------------------------------------------------------------------
# Pure-JAX reference (mirrors the PyTorch semantics) for a silent sanity check
# ----------------------------------------------------------------------------
def _ref_forward(Z, A, params, config):
    def learner(Zi, w):
        Ze = Zi[None] * w[:, None, None, :]
        nrm = jnp.sqrt(jnp.sum(Ze * Ze, axis=-1, keepdims=True))
        Zn = Ze / jnp.maximum(nrm, 1e-12)
        att = jnp.einsum("hbnd,hbmd->hbnm", Zn, Zn).mean(0)
        return att * (att > 0)

    def gnn(x, adj):
        h = jnp.maximum(x @ params["w1"] + params["b1"], 0.0)
        h = h @ params["w2"] + params["b2"]
        h0 = h
        xk = h0
        for _ in range(config.gnn_K):
            xk = jnp.einsum("bnm,bmd->bnd", adj, xk) * (1 - config.gnn_alpha) \
                 + config.gnn_alpha * h0
        return xk / config.gnn_K

    r = config.init_adj_ratio
    A_prime = (1 - r) * learner(Z, params["gl1_w"]) + r * A
    Zp = gnn(Z, A_prime)
    Zpp = gnn(Z, A)
    App = (1 - r) * learner(jnp.concatenate([Zp, Zpp], -1), params["gl2_w"]) + r * A
    A_global = (1 - config.adj_ratio) * A_prime + config.adj_ratio * App
    Z_global = 0.5 * Zp + 0.5 * Zpp
    return A_global, Z_global


# ----------------------------------------------------------------------------
if __name__ == "__main__":
    config = SimpleNamespace(
        gnn_type="appnp",
        d_model=32,
        gnn_K=10,
        gnn_alpha=0.1,
        local_gnn_dropout=0.5,      # identity in eval mode
        num_global_gr_learner_heads=2,
        use_random_graphs=False,
        init_adj_ratio=0.2,
        adj_ratio=0.3,
    )

    B, N, D = 2, 16, config.d_model
    H = config.num_global_gr_learner_heads

    key = jax.random.PRNGKey(0)
    k_z, k_a, k_gl1, k_gl2, k_w1, k_b1, k_w2, k_b2 = jax.random.split(key, 8)

    Z = jax.random.normal(k_z, (B, N, D), dtype=jnp.float32)
    A_raw = jax.random.uniform(k_a, (B, N, N), dtype=jnp.float32)
    A = 0.5 * (A_raw + jnp.swapaxes(A_raw, -1, -2))   # symmetric dense adjacency

    def xavier(k, shape):
        fan_in, fan_out = shape[-1], shape[-2]
        lim = (6.0 / (fan_in + fan_out)) ** 0.5
        return jax.random.uniform(k, shape, jnp.float32, -lim, lim)

    params = {
        "gl1_w": xavier(k_gl1, (H, D)),
        "gl2_w": xavier(k_gl2, (H, 2 * D)),
        # nn.Linear-style deterministic init (uniform in +/- 1/sqrt(fan_in))
        "w1": jax.random.uniform(k_w1, (D, D), jnp.float32, -1.0 / D ** 0.5, 1.0 / D ** 0.5),
        "b1": jax.random.uniform(k_b1, (1, D), jnp.float32, -1.0 / D ** 0.5, 1.0 / D ** 0.5),
        "w2": jax.random.uniform(k_w2, (D, D), jnp.float32, -1.0 / D ** 0.5, 1.0 / D ** 0.5),
        "b2": jax.random.uniform(k_b2, (1, D), jnp.float32, -1.0 / D ** 0.5, 1.0 / D ** 0.5),
    }

    A_global, Z_global = jax.block_until_ready(
        qnet_global_forward(Z, A, params, config))

    # silent correctness check against a pure-JAX reference
    A_ref, Z_ref = _ref_forward(Z, A, params, config)
    assert jnp.allclose(A_global, A_ref, atol=1e-3, rtol=1e-3)
    assert jnp.allclose(Z_global, Z_ref, atol=1e-3, rtol=1e-3)

    print("KERNEL_OK")
</pallas_src>

<mosaic_0001>
module attributes {stable_mosaic.version = 11 : i64} {
  func.func @kernel(%arg0: i32, %arg1: memref<1x16x32xf32, #tpu.memory_space<vmem>>, %arg2: memref<1x16x16xf32, #tpu.memory_space<vmem>>, %arg3: memref<2x32xf32, #tpu.memory_space<vmem>>, %arg4: memref<2x32xf32, #tpu.memory_space<vmem>>, %arg5: memref<2x32xf32, #tpu.memory_space<vmem>>, %arg6: memref<32x32xf32, #tpu.memory_space<vmem>>, %arg7: memref<1x32xf32, #tpu.memory_space<vmem>>, %arg8: memref<32x32xf32, #tpu.memory_space<vmem>>, %arg9: memref<1x32xf32, #tpu.memory_space<vmem>>, %arg10: memref<1x16x16xf32, #tpu.memory_space<vmem>>, %arg11: memref<1x16x32xf32, #tpu.memory_space<vmem>>) attributes {dimension_semantics = [#tpu.dimension_semantics<parallel>], iteration_bounds = array<i64: 2>, scalar_prefetch = 0 : i64, scratch_operands = 0 : i64, tpu.core_type = #tpu.core_type<tc>, window_params = [{transform_indices = @transform_0, window_bounds = array<i64: 1, 16, 32>}, {transform_indices = @transform_1, window_bounds = array<i64: 1, 16, 16>}, {pipeline_mode = #tpu.pipeline_mode<synchronous>, transform_indices = @transform_2, window_bounds = array<i64: 2, 32>}, {pipeline_mode = #tpu.pipeline_mode<synchronous>, transform_indices = @transform_3, window_bounds = array<i64: 2, 32>}, {pipeline_mode = #tpu.pipeline_mode<synchronous>, transform_indices = @transform_4, window_bounds = array<i64: 2, 32>}, {pipeline_mode = #tpu.pipeline_mode<synchronous>, transform_indices = @transform_5, window_bounds = array<i64: 32, 32>}, {pipeline_mode = #tpu.pipeline_mode<synchronous>, transform_indices = @transform_6, window_bounds = array<i64: 1, 32>}, {pipeline_mode = #tpu.pipeline_mode<synchronous>, transform_indices = @transform_7, window_bounds = array<i64: 32, 32>}, {pipeline_mode = #tpu.pipeline_mode<synchronous>, transform_indices = @transform_8, window_bounds = array<i64: 1, 32>}, {transform_indices = @transform_9, window_bounds = array<i64: 1, 16, 16>}, {transform_indices = @transform_10, window_bounds = array<i64: 1, 16, 32>}]} {
    %c0 = arith.constant 0 : index
    %c0_0 = arith.constant 0 : index
    %c0_1 = arith.constant 0 : index
    %0 = vector.load %arg1[%c0, %c0_0, %c0_1] : memref<1x16x32xf32, #tpu.memory_space<vmem>>, vector<1x16x32xf32>
    %1 = vector.shape_cast %0 : vector<1x16x32xf32> to vector<16x32xf32>
    %c0_2 = arith.constant 0 : index
    %c0_3 = arith.constant 0 : index
    %c0_4 = arith.constant 0 : index
    %2 = vector.load %arg2[%c0_2, %c0_3, %c0_4] : memref<1x16x16xf32, #tpu.memory_space<vmem>>, vector<1x16x16xf32>
    %3 = vector.shape_cast %2 : vector<1x16x16xf32> to vector<16x16xf32>
    %c0_5 = arith.constant 0 : index
    %c0_6 = arith.constant 0 : index
    %4 = vector.load %arg3[%c0_5, %c0_6] : memref<2x32xf32, #tpu.memory_space<vmem>>, vector<1x32xf32>
    %5 = vector.broadcast %4 : vector<1x32xf32> to vector<16x32xf32>
    %6 = arith.mulf %1, %5 : vector<16x32xf32>
    %7 = arith.mulf %6, %6 : vector<16x32xf32>
    %cst = arith.constant dense<0.000000e+00> : vector<16xf32>
    %8 = vector.multi_reduction <add>, %7, %cst [1] : vector<16x32xf32> to vector<16xf32>
    %9 = vector.shape_cast %8 : vector<16xf32> to vector<16x1xf32>
    %cst_7 = arith.constant 1.000000e-24 : f32
    %10 = vector.broadcast %cst_7 : f32 to vector<16x1xf32>
    %11 = arith.maximumf %9, %10 : vector<16x1xf32>
    %12 = math.rsqrt %11 : vector<16x1xf32>
    %13 = vector.broadcast %12 : vector<16x1xf32> to vector<16x32xf32>
    %14 = arith.mulf %6, %13 : vector<16x32xf32>
    %c1 = arith.constant 1 : index
    %c0_8 = arith.constant 0 : index
    %15 = vector.load %arg3[%c1, %c0_8] : memref<2x32xf32, #tpu.memory_space<vmem>>, vector<1x32xf32>
    %16 = vector.broadcast %15 : vector<1x32xf32> to vector<16x32xf32>
    %17 = arith.mulf %1, %16 : vector<16x32xf32>
    %18 = arith.mulf %17, %17 : vector<16x32xf32>
    %cst_9 = arith.constant dense<0.000000e+00> : vector<16xf32>
    %19 = vector.multi_reduction <add>, %18, %cst_9 [1] : vector<16x32xf32> to vector<16xf32>
    %20 = vector.shape_cast %19 : vector<16xf32> to vector<16x1xf32>
    %cst_10 = arith.constant 1.000000e-24 : f32
    %21 = vector.broadcast %cst_10 : f32 to vector<16x1xf32>
    %22 = arith.maximumf %20, %21 : vector<16x1xf32>
    %23 = math.rsqrt %22 : vector<16x1xf32>
    %24 = vector.broadcast %23 : vector<16x1xf32> to vector<16x32xf32>
    %25 = arith.mulf %17, %24 : vector<16x32xf32>
    %26 = tpu.concatenate %14, %25 in 1 : vector<16x32xf32>, vector<16x32xf32> -> vector<16x64xf32>
    %cst_11 = arith.constant dense<0.000000e+00> : vector<16x16xf32>
    %27 = tpu.matmul %26, %26, %cst_11 {dimension_numbers = #tpu.dot_dimension_numbers<[1], [1], [0], [0], [0, 0, 1, 0], [], []>} : vector<16x64xf32>, vector<16x64xf32>, vector<16x16xf32> -> vector<16x16xf32>
    %cst_12 = arith.constant 5.000000e-01 : f32
    %28 = vector.broadcast %cst_12 : f32 to vector<16x16xf32>
    %29 = arith.mulf %27, %28 : vector<16x16xf32>
    %cst_13 = arith.constant 0.000000e+00 : f32
    %30 = vector.broadcast %cst_13 : f32 to vector<16x16xf32>
    %31 = arith.maximumf %29, %30 : vector<16x16xf32>
    %cst_14 = arith.constant 8.000000e-01 : f32
    %32 = vector.broadcast %cst_14 : f32 to vector<16x16xf32>
    %33 = arith.mulf %32, %31 : vector<16x16xf32>
    %cst_15 = arith.constant 2.000000e-01 : f32
    %34 = vector.broadcast %cst_15 : f32 to vector<16x16xf32>
    %35 = arith.mulf %34, %3 : vector<16x16xf32>
    %36 = arith.addf %33, %35 : vector<16x16xf32>
    %c0_16 = arith.constant 0 : index
    %c0_17 = arith.constant 0 : index
    %37 = vector.load %arg6[%c0_16, %c0_17] : memref<32x32xf32, #tpu.memory_space<vmem>>, vector<32x32xf32>
    %cst_18 = arith.constant dense<0.000000e+00> : vector<16x32xf32>
    %38 = tpu.matmul %1, %37, %cst_18 {dimension_numbers = #tpu.dot_dimension_numbers<[1], [0], [0], [1], [0, 0, 1, 1], [], []>} : vector<16x32xf32>, vector<32x32xf32>, vector<16x32xf32> -> vector<16x32xf32>
    %c0_19 = arith.constant 0 : index
    %c0_20 = arith.constant 0 : index
    %39 = vector.load %arg7[%c0_19, %c0_20] : memref<1x32xf32, #tpu.memory_space<vmem>>, vector<1x32xf32>
    %40 = vector.broadcast %39 : vector<1x32xf32> to vector<16x32xf32>
    %41 = arith.addf %38, %40 : vector<16x32xf32>
    %cst_21 = arith.constant 0.000000e+00 : f32
    %42 = vector.broadcast %cst_21 : f32 to vector<16x32xf32>
    %43 = arith.maximumf %41, %42 : vector<16x32xf32>
    %c0_22 = arith.constant 0 : index
    %c0_23 = arith.constant 0 : index
    %44 = vector.load %arg8[%c0_22, %c0_23] : memref<32x32xf32, #tpu.memory_space<vmem>>, vector<32x32xf32>
    %cst_24 = arith.constant dense<0.000000e+00> : vector<16x32xf32>
    %45 = tpu.matmul %43, %44, %cst_24 {dimension_numbers = #tpu.dot_dimension_numbers<[1], [0], [0], [1], [0, 0, 1, 1], [], []>} : vector<16x32xf32>, vector<32x32xf32>, vector<16x32xf32> -> vector<16x32xf32>
    %c0_25 = arith.constant 0 : index
    %c0_26 = arith.constant 0 : index
    %46 = vector.load %arg9[%c0_25, %c0_26] : memref<1x32xf32, #tpu.memory_space<vmem>>, vector<1x32xf32>
    %47 = vector.broadcast %46 : vector<1x32xf32> to vector<16x32xf32>
    %48 = arith.addf %45, %47 : vector<16x32xf32>
    %cst_27 = arith.constant 0.000000e+00 : f32
    %49 = vector.broadcast %cst_27 : f32 to vector<16x16xf32>
    %cst_28 = arith.constant 0.899999976 : f32
    %50 = vector.broadcast %cst_28 : f32 to vector<16x16xf32>
    %51 = arith.mulf %36, %50 : vector<16x16xf32>
    %52 = tpu.concatenate %51, %49 in 1 : vector<16x16xf32>, vector<16x16xf32> -> vector<16x32xf32>
    %cst_29 = arith.constant 0.899999976 : f32
    %53 = vector.broadcast %cst_29 : f32 to vector<16x16xf32>
    %54 = arith.mulf %3, %53 : vector<16x16xf32>
    %55 = tpu.concatenate %49, %54 in 1 : vector<16x16xf32>, vector<16x16xf32> -> vector<16x32xf32>
    %56 = tpu.concatenate %52, %55 in 0 : vector<16x32xf32>, vector<16x32xf32> -> vector<32x32xf32>
    %57 = tpu.concatenate %48, %48 in 0 : vector<16x32xf32>, vector<16x32xf32> -> vector<32x32xf32>
    %cst_30 = arith.constant 1.000000e-01 : f32
    %58 = vector.broadcast %cst_30 : f32 to vector<32x32xf32>
    %59 = arith.mulf %58, %57 : vector<32x32xf32>
    %cst_31 = arith.constant dense<0.000000e+00> : vector<32x32xf32>
    %60 = tpu.matmul %56, %57, %cst_31 {dimension_numbers = #tpu.dot_dimension_numbers<[1], [0], [0], [1], [0, 0, 1, 1], [], []>} : vector<32x32xf32>, vector<32x32xf32>, vector<32x32xf32> -> vector<32x32xf32>
    %61 = arith.addf %60, %59 : vector<32x32xf32>
    %cst_32 = arith.constant dense<0.000000e+00> : vector<32x32xf32>
    %62 = tpu.matmul %56, %61, %cst_32 {dimension_numbers = #tpu.dot_dimension_numbers<[1], [0], [0], [1], [0, 0, 1, 1], [], []>} : vector<32x32xf32>, vector<32x32xf32>, vector<32x32xf32> -> vector<32x32xf32>
    %63 = arith.addf %62, %59 : vector<32x32xf32>
    %cst_33 = arith.constant dense<0.000000e+00> : vector<32x32xf32>
    %64 = tpu.matmul %56, %63, %cst_33 {dimension_numbers = #tpu.dot_dimension_numbers<[1], [0], [0], [1], [0, 0, 1, 1], [], []>} : vector<32x32xf32>, vector<32x32xf32>, vector<32x32xf32> -> vector<32x32xf32>
    %65 = arith.addf %64, %59 : vector<32x32xf32>
    %cst_34 = arith.constant dense<0.000000e+00> : vector<32x32xf32>
    %66 = tpu.matmul %56, %65, %cst_34 {dimension_numbers = #tpu.dot_dimension_numbers<[1], [0], [0], [1], [0, 0, 1, 1], [], []>} : vector<32x32xf32>, vector<32x32xf32>, vector<32x32xf32> -> vector<32x32xf32>
    %67 = arith.addf %66, %59 : vector<32x32xf32>
    %cst_35 = arith.constant dense<0.000000e+00> : vector<32x32xf32>
    %68 = tpu.matmul %56, %67, %cst_35 {dimension_numbers = #tpu.dot_dimension_numbers<[1], [0], [0], [1], [0, 0, 1, 1], [], []>} : vector<32x32xf32>, vector<32x32xf32>, vector<32x32xf32> -> vector<32x32xf32>
    %69 = arith.addf %68, %59 : vector<32x32xf32>
    %cst_36 = arith.constant dense<0.000000e+00> : vector<32x32xf32>
    %70 = tpu.matmul %56, %69, %cst_36 {dimension_numbers = #tpu.dot_dimension_numbers<[1], [0], [0], [1], [0, 0, 1, 1], [], []>} : vector<32x32xf32>, vector<32x32xf32>, vector<32x32xf32> -> vector<32x32xf32>
    %71 = arith.addf %70, %59 : vector<32x32xf32>
    %cst_37 = arith.constant dense<0.000000e+00> : vector<32x32xf32>
    %72 = tpu.matmul %56, %71, %cst_37 {dimension_numbers = #tpu.dot_dimension_numbers<[1], [0], [0], [1], [0, 0, 1, 1], [], []>} : vector<32x32xf32>, vector<32x32xf32>, vector<32x32xf32> -> vector<32x32xf32>
    %73 = arith.addf %72, %59 : vector<32x32xf32>
    %cst_38 = arith.constant dense<0.000000e+00> : vector<32x32xf32>
    %74 = tpu.matmul %56, %73, %cst_38 {dimension_numbers = #tpu.dot_dimension_numbers<[1], [0], [0], [1], [0, 0, 1, 1], [], []>} : vector<32x32xf32>, vector<32x32xf32>, vector<32x32xf32> -> vector<32x32xf32>
    %75 = arith.addf %74, %59 : vector<32x32xf32>
    %cst_39 = arith.constant dense<0.000000e+00> : vector<32x32xf32>
    %76 = tpu.matmul %56, %75, %cst_39 {dimension_numbers = #tpu.dot_dimension_numbers<[1], [0], [0], [1], [0, 0, 1, 1], [], []>} : vector<32x32xf32>, vector<32x32xf32>, vector<32x32xf32> -> vector<32x32xf32>
    %77 = arith.addf %76, %59 : vector<32x32xf32>
    %cst_40 = arith.constant dense<0.000000e+00> : vector<32x32xf32>
    %78 = tpu.matmul %56, %77, %cst_40 {dimension_numbers = #tpu.dot_dimension_numbers<[1], [0], [0], [1], [0, 0, 1, 1], [], []>} : vector<32x32xf32>, vector<32x32xf32>, vector<32x32xf32> -> vector<32x32xf32>
    %79 = arith.addf %78, %59 : vector<32x32xf32>
    %cst_41 = arith.constant 1.000000e-01 : f32
    %80 = vector.broadcast %cst_41 : f32 to vector<32x32xf32>
    %81 = arith.mulf %79, %80 : vector<32x32xf32>
    %82 = vector.extract_strided_slice %81 {offsets = [0, 0], sizes = [16, 32], strides = [1, 1]} : vector<32x32xf32> to vector<16x32xf32>
    %83 = vector.extract_strided_slice %81 {offsets = [16, 0], sizes = [16, 32], strides = [1, 1]} : vector<32x32xf32> to vector<16x32xf32>
    %c0_42 = arith.constant 0 : index
    %c0_43 = arith.constant 0 : index
    %84 = vector.load %arg4[%c0_42, %c0_43] : memref<2x32xf32, #tpu.memory_space<vmem>>, vector<1x32xf32>
    %85 = vector.broadcast %84 : vector<1x32xf32> to vector<16x32xf32>
    %86 = arith.mulf %82, %85 : vector<16x32xf32>
    %c0_44 = arith.constant 0 : index
    %c0_45 = arith.constant 0 : index
    %87 = vector.load %arg5[%c0_44, %c0_45] : memref<2x32xf32, #tpu.memory_space<vmem>>, vector<1x32xf32>
    %88 = vector.broadcast %87 : vector<1x32xf32> to vector<16x32xf32>
    %89 = arith.mulf %83, %88 : vector<16x32xf32>
    %90 = arith.mulf %86, %86 : vector<16x32xf32>
    %cst_46 = arith.constant dense<0.000000e+00> : vector<16xf32>
    %91 = vector.multi_reduction <add>, %90, %cst_46 [1] : vector<16x32xf32> to vector<16xf32>
    %92 = vector.shape_cast %91 : vector<16xf32> to vector<16x1xf32>
    %93 = arith.mulf %89, %89 : vector<16x32xf32>
    %cst_47 = arith.constant dense<0.000000e+00> : vector<16xf32>
    %94 = vector.multi_reduction <add>, %93, %cst_47 [1] : vector<16x32xf32> to vector<16xf32>
    %95 = vector.shape_cast %94 : vector<16xf32> to vector<16x1xf32>
    %96 = arith.addf %92, %95 : vector<16x1xf32>
    %cst_48 = arith.constant 1.000000e-24 : f32
    %97 = vector.broadcast %cst_48 : f32 to vector<16x1xf32>
    %98 = arith.maximumf %96, %97 : vector<16x1xf32>
    %99 = math.rsqrt %98 : vector<16x1xf32>
    %100 = vector.broadcast %99 : vector<16x1xf32> to vector<16x32xf32>
    %101 = arith.mulf %86, %100 : vector<16x32xf32>
    %102 = vector.broadcast %99 : vector<16x1xf32> to vector<16x32xf32>
    %103 = arith.mulf %89, %102 : vector<16x32xf32>
    %c1_49 = arith.constant 1 : index
    %c0_50 = arith.constant 0 : index
    %104 = vector.load %arg4[%c1_49, %c0_50] : memref<2x32xf32, #tpu.memory_space<vmem>>, vector<1x32xf32>
    %105 = vector.broadcast %104 : vector<1x32xf32> to vector<16x32xf32>
    %106 = arith.mulf %82, %105 : vector<16x32xf32>
    %c1_51 = arith.constant 1 : index
    %c0_52 = arith.constant 0 : index
    %107 = vector.load %arg5[%c1_51, %c0_52] : memref<2x32xf32, #tpu.memory_space<vmem>>, vector<1x32xf32>
    %108 = vector.broadcast %107 : vector<1x32xf32> to vector<16x32xf32>
    %109 = arith.mulf %83, %108 : vector<16x32xf32>
    %110 = arith.mulf %106, %106 : vector<16x32xf32>
    %cst_53 = arith.constant dense<0.000000e+00> : vector<16xf32>
    %111 = vector.multi_reduction <add>, %110, %cst_53 [1] : vector<16x32xf32> to vector<16xf32>
    %112 = vector.shape_cast %111 : vector<16xf32> to vector<16x1xf32>
    %113 = arith.mulf %109, %109 : vector<16x32xf32>
    %cst_54 = arith.constant dense<0.000000e+00> : vector<16xf32>
    %114 = vector.multi_reduction <add>, %113, %cst_54 [1] : vector<16x32xf32> to vector<16xf32>
    %115 = vector.shape_cast %114 : vector<16xf32> to vector<16x1xf32>
    %116 = arith.addf %112, %115 : vector<16x1xf32>
    %cst_55 = arith.constant 1.000000e-24 : f32
    %117 = vector.broadcast %cst_55 : f32 to vector<16x1xf32>
    %118 = arith.maximumf %116, %117 : vector<16x1xf32>
    %119 = math.rsqrt %118 : vector<16x1xf32>
    %120 = vector.broadcast %119 : vector<16x1xf32> to vector<16x32xf32>
    %121 = arith.mulf %106, %120 : vector<16x32xf32>
    %122 = vector.broadcast %119 : vector<16x1xf32> to vector<16x32xf32>
    %123 = arith.mulf %109, %122 : vector<16x32xf32>
    %124 = tpu.concatenate %101, %103, %121, %123 in 1 : vector<16x32xf32>, vector<16x32xf32>, vector<16x32xf32>, vector<16x32xf32> -> vector<16x128xf32>
    %cst_56 = arith.constant dense<0.000000e+00> : vector<16x16xf32>
    %125 = tpu.matmul %124, %124, %cst_56 {dimension_numbers = #tpu.dot_dimension_numbers<[1], [1], [0], [0], [0, 0, 1, 0], [], []>} : vector<16x128xf32>, vector<16x128xf32>, vector<16x16xf32> -> vector<16x16xf32>
    %cst_57 = arith.constant 5.000000e-01 : f32
    %126 = vector.broadcast %cst_57 : f32 to vector<16x16xf32>
    %127 = arith.mulf %125, %126 : vector<16x16xf32>
    %cst_58 = arith.constant 0.000000e+00 : f32
    %128 = vector.broadcast %cst_58 : f32 to vector<16x16xf32>
    %129 = arith.maximumf %127, %128 : vector<16x16xf32>
    %cst_59 = arith.constant 8.000000e-01 : f32
    %130 = vector.broadcast %cst_59 : f32 to vector<16x16xf32>
    %131 = arith.mulf %130, %129 : vector<16x16xf32>
    %cst_60 = arith.constant 2.000000e-01 : f32
    %132 = vector.broadcast %cst_60 : f32 to vector<16x16xf32>
    %133 = arith.mulf %132, %3 : vector<16x16xf32>
    %134 = arith.addf %131, %133 : vector<16x16xf32>
    %cst_61 = arith.constant 0.699999988 : f32
    %135 = vector.broadcast %cst_61 : f32 to vector<16x16xf32>
    %136 = arith.mulf %135, %36 : vector<16x16xf32>
    %cst_62 = arith.constant 3.000000e-01 : f32
    %137 = vector.broadcast %cst_62 : f32 to vector<16x16xf32>
    %138 = arith.mulf %137, %134 : vector<16x16xf32>
    %139 = arith.addf %136, %138 : vector<16x16xf32>
    %c0_63 = arith.constant 0 : index
    %c0_64 = arith.constant 0 : index
    %c0_65 = arith.constant 0 : index
    %140 = vector.load %arg10[%c0_63, %c0_64, %c0_65] : memref<1x16x16xf32, #tpu.memory_space<vmem>>, vector<1x16x16xf32>
    %141 = vector.shape_cast %140 : vector<1x16x16xf32> to vector<16x16xf32>
    %142 = vector.shape_cast %139 : vector<16x16xf32> to vector<1x16x16xf32>
    tpu.vector_store %arg10[%c0_63, %c0_64, %c0_65], %142 {strides = array<i32>} : memref<1x16x16xf32, #tpu.memory_space<vmem>>, vector<1x16x16xf32>,
    %143 = arith.addf %82, %83 : vector<16x32xf32>
    %cst_66 = arith.constant 5.000000e-01 : f32
    %144 = vector.broadcast %cst_66 : f32 to vector<16x32xf32>
    %145 = arith.mulf %144, %143 : vector<16x32xf32>
    %c0_67 = arith.constant 0 : index
    %c0_68 = arith.constant 0 : index
    %c0_69 = arith.constant 0 : index
    %146 = vector.load %arg11[%c0_67, %c0_68, %c0_69] : memref<1x16x32xf32, #tpu.memory_space<vmem>>, vector<1x16x32xf32>
    %147 = vector.shape_cast %146 : vector<1x16x32xf32> to vector<16x32xf32>
    %148 = vector.shape_cast %145 : vector<16x32xf32> to vector<1x16x32xf32>
    tpu.vector_store %arg11[%c0_67, %c0_68, %c0_69], %148 {strides = array<i32>} : memref<1x16x32xf32, #tpu.memory_space<vmem>>, vector<1x16x32xf32>,
    return
  }
  func.func @transform_0(%arg0: i32) -> (i32, i32, i32) {
    %c0_i32 = arith.constant 0 : i32
    %c0_i32_0 = arith.constant 0 : i32
    %c0_i32_1 = arith.constant 0 : i32
    return %arg0, %c0_i32, %c0_i32_0 : i32, i32, i32
  }
  func.func @transform_1(%arg0: i32) -> (i32, i32, i32) {
    %c0_i32 = arith.constant 0 : i32
    %c0_i32_0 = arith.constant 0 : i32
    %c0_i32_1 = arith.constant 0 : i32
    return %arg0, %c0_i32, %c0_i32_0 : i32, i32, i32
  }
  func.func @transform_2(%arg0: i32) -> (i32, i32) {
    %c0_i32 = arith.constant 0 : i32
    %c0_i32_0 = arith.constant 0 : i32
    %c0_i32_1 = arith.constant 0 : i32
    return %c0_i32, %c0_i32_0 : i32, i32
  }
  func.func @transform_3(%arg0: i32) -> (i32, i32) {
    %c0_i32 = arith.constant 0 : i32
    %c0_i32_0 = arith.constant 0 : i32
    %c0_i32_1 = arith.constant 0 : i32
    return %c0_i32, %c0_i32_0 : i32, i32
  }
  func.func @transform_4(%arg0: i32) -> (i32, i32) {
    %c0_i32 = arith.constant 0 : i32
    %c0_i32_0 = arith.constant 0 : i32
    %c0_i32_1 = arith.constant 0 : i32
    return %c0_i32, %c0_i32_0 : i32, i32
  }
  func.func @transform_5(%arg0: i32) -> (i32, i32) {
    %c0_i32 = arith.constant 0 : i32
    %c0_i32_0 = arith.constant 0 : i32
    %c0_i32_1 = arith.constant 0 : i32
    return %c0_i32, %c0_i32_0 : i32, i32
  }
  func.func @transform_6(%arg0: i32) -> (i32, i32) {
    %c0_i32 = arith.constant 0 : i32
    %c0_i32_0 = arith.constant 0 : i32
    %c0_i32_1 = arith.constant 0 : i32
    return %c0_i32, %c0_i32_0 : i32, i32
  }
  func.func @transform_7(%arg0: i32) -> (i32, i32) {
    %c0_i32 = arith.constant 0 : i32
    %c0_i32_0 = arith.constant 0 : i32
    %c0_i32_1 = arith.constant 0 : i32
    return %c0_i32, %c0_i32_0 : i32, i32
  }
  func.func @transform_8(%arg0: i32) -> (i32, i32) {
    %c0_i32 = arith.constant 0 : i32
    %c0_i32_0 = arith.constant 0 : i32
    %c0_i32_1 = arith.constant 0 : i32
    return %c0_i32, %c0_i32_0 : i32, i32
  }
  func.func @transform_9(%arg0: i32) -> (i32, i32, i32) {
    %c0_i32 = arith.constant 0 : i32
    %c0_i32_0 = arith.constant 0 : i32
    %c0_i32_1 = arith.constant 0 : i32
    return %arg0, %c0_i32, %c0_i32_0 : i32, i32, i32
  }
  func.func @transform_10(%arg0: i32) -> (i32, i32, i32) {
    %c0_i32 = arith.constant 0 : i32
    %c0_i32_0 = arith.constant 0 : i32
    %c0_i32_1 = arith.constant 0 : i32
    return %arg0, %c0_i32, %c0_i32_0 : i32, i32, i32
  }
}

</mosaic_0001>

<llo_original>
// kernel: tpu_custom_call.1
$region0: #{tpu_custom_call.1}
  #allocation0 [shape = 'u32[]', space=smem, size = 0x4, offset = 0x4, fixed_abs, tag = 'smem constant byte address 0x4 - core index']
  #allocation1 [shape = 'u32[72,128]{1,0:T(1,128)}', space=vmem, size = 0x9000, scoped, tag = 'internal scratch']
  %s0 = inlined_call_operand.hbm [shape: f32[2,16,32], index: 0, kind: input, shape index: {}]
  %s1 = inlined_call_operand.hbm [shape: f32[2,16,16], index: 1, kind: input, shape index: {}]
  %s2 = inlined_call_operand.hbm [shape: f32[2,32], index: 2, kind: input, shape index: {}]
  %s3 = inlined_call_operand.vmem [shape: f32[2,32], index: 3, kind: input, shape index: {}]
  %s4 = inlined_call_operand.hbm [shape: f32[2,32], index: 4, kind: input, shape index: {}]
  %s5 = inlined_call_operand.hbm [shape: f32[32,32], index: 5, kind: input, shape index: {}]
  %s6 = inlined_call_operand.vmem [shape: f32[1,32], index: 6, kind: input, shape index: {}]
  %s7 = inlined_call_operand.hbm [shape: f32[32,32], index: 7, kind: input, shape index: {}]
  %s8 = inlined_call_operand.vmem [shape: f32[1,32], index: 8, kind: input, shape index: {}]
  %s9 = inlined_call_operand.hbm [shape: f32[2,16,16], index: 9, kind: output, shape index: {0}]
  %s10 = inlined_call_operand.hbm [shape: f32[2,16,32], index: 10, kind: output, shape index: {1}]
  %11 = xla_tuple %s9, %s10
  %s12 = sld [smem:[#allocation0]]
  $region101: #{tpu_custom_call.1} parent=0
    _
  %s14 = ssub.s32 1, %s12
  %s15 = scalar_select 0, %s14, %s12
  $region1: #{tpu_custom_call.1} parent=0
    #allocation2 [shape = 'u8[16384]{0}', space=vmem, size = 0x4000, scoped, tag = 'input window, operand 0']
    #allocation3 [shape = 's32[2]{0}', space=sflag, size = 0x8, scoped, tag = 'scoped memory for tpu_custom_call.1']
    #allocation4 [shape = 's32[2]{0}', space=sflag, size = 0x8, scoped, tag = 'scoped memory for tpu_custom_call.1']
    #allocation5 [shape = 'u8[16384]{0}', space=vmem, size = 0x4000, scoped, tag = 'input window, operand 1']
    #allocation6 [shape = 's32[2]{0}', space=sflag, size = 0x8, scoped, tag = 'scoped memory for tpu_custom_call.1']
    #allocation7 [shape = 'u8[1024]{0}', space=vmem, size = 0x400, scoped, tag = 'input window, operand 2, single buffered']
    #allocation8 [shape = 'u8[1024]{0}', space=vmem, size = 0x400, scoped, tag = 'input window, operand 4, single buffered']
    #allocation9 [shape = 's32[1]{0}', space=sflag, size = 0x4, scoped, tag = 'scoped memory for tpu_custom_call.1']
    #allocation10 [shape = 'u8[16384]{0}', space=vmem, size = 0x4000, scoped, tag = 'input window, operand 5, single buffered']
    #allocation11 [shape = 'u8[16384]{0}', space=vmem, size = 0x4000, scoped, tag = 'input window, operand 7, single buffered']
    #allocation12 [shape = 's32[1]{0}', space=sflag, size = 0x4, scoped, tag = 'scoped memory for tpu_custom_call.1']
    #allocation13 [shape = 'u8[16384]{0}', space=vmem, size = 0x4000, scoped, tag = 'output window, operand 0']
    #allocation14 [shape = 'u8[16384]{0}', space=vmem, size = 0x4000, scoped, tag = 'output window, operand 1']
    #allocation15 [shape = 's32[2]{0}', space=sflag, size = 0x8, scoped, tag = 'scoped memory for tpu_custom_call.1']
    %16 = vsyncpa [#allocation3], 0
    %s17 = scalar_lea.sflag [#allocation3], 1
    %18 = vsyncpa %s17, 0
    %19 = vsyncpa [#allocation6], 0
    %s20 = scalar_lea.sflag [#allocation6], 1
    %21 = vsyncpa %s20, 0
    %22 = vsyncpa [#allocation9], 0
    %23 = vsyncpa [#allocation12], 0
    %24 = vsyncpa [#allocation4], 0
    %s25 = scalar_lea.sflag [#allocation4], 1
    %26 = vsyncpa %s25, 0
    %27 = vsyncpa [#allocation15], 0
    %s28 = scalar_lea.sflag [#allocation15], 1
    %29 = vsyncpa %s28, 0
    loop: start=0, step=1, limit=4
    $region2: #{tpu_custom_call.1} parent=1 // loop_pre_header
      _
    $region3: #{tpu_custom_call.1} parent=1 // loop_header
      %s31 = sphi 0, %s35
      %p32 = scmp.ge.s32.totalorder %s31, 4
      %s41 = sphi 0, %s43
      %s44 = sphi 0, %s41
      %s45 = sphi 0, %s44
      %s61 = sphi 0, %s45
      %s67 = sphi 0, %s69
      %s70 = sphi 0, %s67
      %s71 = sphi 0, %s70
      %s87 = sphi 0, %s71
      %s91 = sphi 0, %s91
      %s93 = sphi 0, %s91
      %s94 = sphi 0, %s93
      %s108 = sphi 0, %s94
      %s112 = sphi 0, %s112
      %s114 = sphi 0, %s112
      %s115 = sphi 0, %s114
      %s129 = sphi 0, %s115
      %s133 = sphi 0, %s133
      %s135 = sphi 0, %s133
      %s136 = sphi 0, %s135
      %s150 = sphi 0, %s136
      %s154 = sphi 0, %s154
      %s156 = sphi 0, %s154
      %s157 = sphi 0, %s156
      %s171 = sphi 0, %s157
      %s175 = sphi 0, %s175
      %s177 = sphi 0, %s175
      %s178 = sphi 0, %s177
      %s192 = sphi 0, %s178
      %s196 = sphi 0, %s196
      %s198 = sphi 0, %s196
      %s199 = sphi 0, %s198
      %s213 = sphi 0, %s199
      %s217 = sphi 0, %s217
      %s219 = sphi 0, %s217
      %s220 = sphi 0, %s219
      %s234 = sphi 0, %s220
      %s240 = sphi 0, %s242
      %s243 = sphi 0, %s240
      %s244 = sphi 0, %s243
      %s260 = sphi 0, %s244
      %s266 = sphi 0, %s268
      %s269 = sphi 0, %s266
      %s270 = sphi 0, %s269
      %s286 = sphi 0, %s270
    $region4: #{tpu_custom_call.1} parent=1 // loop_header_branch
      %34 = sbr.rel (%p32) target = $region8
    $region5: #{tpu_custom_call.1} parent=1 // loop_body
      %s36 = ssub.s32 %s31, 1
      %s37 = ssub.s32 %s31, 2
      %s38 = sadd.s32 %s31, 1
      %s39 = ssub.s32 %s31, %s38
      %p40 = scmp.eq.s32.totalorder %s39, 0
      %s42 = sadd.s32 %s41, 1
      %s43 = scalar_select %p40, %s41, %s42
      %p46 = pneg %p40
      %p47 = scmp.eq.s32.totalorder %s31, 1
      %p48 = por %p46, %p47
      %p49 = scmp.ne.s32.totalorder %s41, %s44
      %p50 = scmp.eq.s32.totalorder %s31, 0
      %p51 = por %p49, %p50
      %p52 = scmp.ne.s32.totalorder %s41, %s44
      %p53 = scmp.eq.s32.totalorder %s36, 1
      %p54 = por %p52, %p53
      %p55 = scmp.ne.s32.totalorder %s44, %s45
      %p56 = scmp.eq.s32.totalorder %s36, 0
      %p57 = por %p55, %p56
      %p58 = scmp.ne.s32.totalorder %s44, %s45
      %p59 = scmp.eq.s32.totalorder %s37, 1
      %p60 = por %p58, %p59
      %p62 = scmp.ne.s32.totalorder %s45, %s61
      %p63 = scmp.eq.s32.totalorder %s37, 0
      %p64 = por %p62, %p63
      %s65 = ssub.s32 %s31, %s38
      %p66 = scmp.eq.s32.totalorder %s65, 0
      %s68 = sadd.s32 %s67, 1
      %s69 = scalar_select %p66, %s67, %s68
      %p72 = pneg %p66
      %p73 = scmp.eq.s32.totalorder %s31, 1
      %p74 = por %p72, %p73
      %p75 = scmp.ne.s32.totalorder %s67, %s70
      %p76 = scmp.eq.s32.totalorder %s31, 0
      %p77 = por %p75, %p76
      %p78 = scmp.ne.s32.totalorder %s67, %s70
      %p79 = scmp.eq.s32.totalorder %s36, 1
      %p80 = por %p78, %p79
      %p81 = scmp.ne.s32.totalorder %s70, %s71
      %p82 = scmp.eq.s32.totalorder %s36, 0
      %p83 = por %p81, %p82
      %p84 = scmp.ne.s32.totalorder %s70, %s71
      %p85 = scmp.eq.s32.totalorder %s37, 1
      %p86 = por %p84, %p85
      %p88 = scmp.ne.s32.totalorder %s71, %s87
      %p89 = scmp.eq.s32.totalorder %s37, 0
      %p90 = por %p88, %p89
      %s92 = sadd.s32 %s91, 1
      %p95 = scmp.eq.s32.totalorder %s31, 1
      %p96 = scmp.ne.s32.totalorder %s91, %s93
      %p97 = scmp.eq.s32.totalorder %s31, 0
      %p98 = por %p96, %p97
      %p99 = scmp.ne.s32.totalorder %s91, %s93
      %p100 = scmp.eq.s32.totalorder %s36, 1
      %p101 = por %p99, %p100
      %p102 = scmp.ne.s32.totalorder %s93, %s94
      %p103 = scmp.eq.s32.totalorder %s36, 0
      %p104 = por %p102, %p103
      %p105 = scmp.ne.s32.totalorder %s93, %s94
      %p106 = scmp.eq.s32.totalorder %s37, 1
      %p107 = por %p105, %p106
      %p109 = scmp.ne.s32.totalorder %s94, %s108
      %p110 = scmp.eq.s32.totalorder %s37, 0
      %p111 = por %p109, %p110
      %s113 = sadd.s32 %s112, 1
      %p116 = scmp.eq.s32.totalorder %s31, 1
      %p117 = scmp.ne.s32.totalorder %s112, %s114
      %p118 = scmp.eq.s32.totalorder %s31, 0
      %p119 = por %p117, %p118
      %p120 = scmp.ne.s32.totalorder %s112, %s114
      %p121 = scmp.eq.s32.totalorder %s36, 1
      %p122 = por %p120, %p121
      %p123 = scmp.ne.s32.totalorder %s114, %s115
      %p124 = scmp.eq.s32.totalorder %s36, 0
      %p125 = por %p123, %p124
      %p126 = scmp.ne.s32.totalorder %s114, %s115
      %p127 = scmp.eq.s32.totalorder %s37, 1
      %p128 = por %p126, %p127
      %p130 = scmp.ne.s32.totalorder %s115, %s129
      %p131 = scmp.eq.s32.totalorder %s37, 0
      %p132 = por %p130, %p131
      %s134 = sadd.s32 %s133, 1
      %p137 = scmp.eq.s32.totalorder %s31, 1
      %p138 = scmp.ne.s32.totalorder %s133, %s135
      %p139 = scmp.eq.s32.totalorder %s31, 0
      %p140 = por %p138, %p139
      %p141 = scmp.ne.s32.totalorder %s133, %s135
      %p142 = scmp.eq.s32.totalorder %s36, 1
      %p143 = por %p141, %p142
      %p144 = scmp.ne.s32.totalorder %s135, %s136
      %p145 = scmp.eq.s32.totalorder %s36, 0
      %p146 = por %p144, %p145
      %p147 = scmp.ne.s32.totalorder %s135, %s136
      %p148 = scmp.eq.s32.totalorder %s37, 1
      %p149 = por %p147, %p148
      %p151 = scmp.ne.s32.totalorder %s136, %s150
      %p152 = scmp.eq.s32.totalorder %s37, 0
      %p153 = por %p151, %p152
      %s155 = sadd.s32 %s154, 1
      %p158 = scmp.eq.s32.totalorder %s31, 1
      %p159 = scmp.ne.s32.totalorder %s154, %s156
      %p160 = scmp.eq.s32.totalorder %s31, 0
      %p161 = por %p159, %p160
      %p162 = scmp.ne.s32.totalorder %s154, %s156
      %p163 = scmp.eq.s32.totalorder %s36, 1
      %p164 = por %p162, %p163
      %p165 = scmp.ne.s32.totalorder %s156, %s157
      %p166 = scmp.eq.s32.totalorder %s36, 0
      %p167 = por %p165, %p166
      %p168 = scmp.ne.s32.totalorder %s156, %s157
      %p169 = scmp.eq.s32.totalorder %s37, 1
      %p170 = por %p168, %p169
      %p172 = scmp.ne.s32.totalorder %s157, %s171
      %p173 = scmp.eq.s32.totalorder %s37, 0
      %p174 = por %p172, %p173
      %s176 = sadd.s32 %s175, 1
      %p179 = scmp.eq.s32.totalorder %s31, 1
      %p180 = scmp.ne.s32.totalorder %s175, %s177
      %p181 = scmp.eq.s32.totalorder %s31, 0
      %p182 = por %p180, %p181
      %p183 = scmp.ne.s32.totalorder %s175, %s177
      %p184 = scmp.eq.s32.totalorder %s36, 1
      %p185 = por %p183, %p184
      %p186 = scmp.ne.s32.totalorder %s177, %s178
      %p187 = scmp.eq.s32.totalorder %s36, 0
      %p188 = por %p186, %p187
      %p189 = scmp.ne.s32.totalorder %s177, %s178
      %p190 = scmp.eq.s32.totalorder %s37, 1
      %p191 = por %p189, %p190
      %p193 = scmp.ne.s32.totalorder %s178, %s192
      %p194 = scmp.eq.s32.totalorder %s37, 0
      %p195 = por %p193, %p194
      %s197 = sadd.s32 %s196, 1
      %p200 = scmp.eq.s32.totalorder %s31, 1
      %p201 = scmp.ne.s32.totalorder %s196, %s198
      %p202 = scmp.eq.s32.totalorder %s31, 0
      %p203 = por %p201, %p202
      %p204 = scmp.ne.s32.totalorder %s196, %s198
      %p205 = scmp.eq.s32.totalorder %s36, 1
      %p206 = por %p204, %p205
      %p207 = scmp.ne.s32.totalorder %s198, %s199
      %p208 = scmp.eq.s32.totalorder %s36, 0
      %p209 = por %p207, %p208
      %p210 = scmp.ne.s32.totalorder %s198, %s199
      %p211 = scmp.eq.s32.totalorder %s37, 1
      %p212 = por %p210, %p211
      %p214 = scmp.ne.s32.totalorder %s199, %s213
      %p215 = scmp.eq.s32.totalorder %s37, 0
      %p216 = por %p214, %p215
      %s218 = sadd.s32 %s217, 1
      %p221 = scmp.eq.s32.totalorder %s31, 1
      %p222 = scmp.ne.s32.totalorder %s217, %s219
      %p223 = scmp.eq.s32.totalorder %s31, 0
      %p224 = por %p222, %p223
      %p225 = scmp.ne.s32.totalorder %s217, %s219
      %p226 = scmp.eq.s32.totalorder %s36, 1
      %p227 = por %p225, %p226
      %p228 = scmp.ne.s32.totalorder %s219, %s220
      %p229 = scmp.eq.s32.totalorder %s36, 0
      %p230 = por %p228, %p229
      %p231 = scmp.ne.s32.totalorder %s219, %s220
      %p232 = scmp.eq.s32.totalorder %s37, 1
      %p233 = por %p231, %p232
      %p235 = scmp.ne.s32.totalorder %s220, %s234
      %p236 = scmp.eq.s32.totalorder %s37, 0
      %p237 = por %p235, %p236
      %s238 = ssub.s32 %s31, %s38
      %p239 = scmp.eq.s32.totalorder %s238, 0
      %s241 = sadd.s32 %s240, 1
      %s242 = scalar_select %p239, %s240, %s241
      %p245 = pneg %p239
      %p246 = scmp.eq.s32.totalorder %s31, 1
      %p247 = por %p245, %p246
      %p248 = scmp.ne.s32.totalorder %s240, %s243
      %p249 = scmp.eq.s32.totalorder %s31, 0
      %p250 = por %p248, %p249
      %p251 = scmp.ne.s32.totalorder %s240, %s243
      %p252 = scmp.eq.s32.totalorder %s36, 1
      %p253 = por %p251, %p252
      %p254 = scmp.ne.s32.totalorder %s243, %s244
      %p255 = scmp.eq.s32.totalorder %s36, 0
      %p256 = por %p254, %p255
      %p257 = scmp.ne.s32.totalorder %s243, %s244
      %p258 = scmp.eq.s32.totalorder %s37, 1
      %p259 = por %p257, %p258
      %p261 = scmp.ne.s32.totalorder %s244, %s260
      %p262 = scmp.eq.s32.totalorder %s37, 0
      %p263 = por %p261, %p262
      %s264 = ssub.s32 %s31, %s38
      %p265 = scmp.eq.s32.totalorder %s264, 0
      %s267 = sadd.s32 %s266, 1
      %s268 = scalar_select %p265, %s266, %s267
      %p271 = pneg %p265
      %p272 = scmp.eq.s32.totalorder %s31, 1
      %p273 = por %p271, %p272
      %p274 = scmp.ne.s32.totalorder %s266, %s269
      %p275 = scmp.eq.s32.totalorder %s31, 0
      %p276 = por %p274, %p275
      %p277 = scmp.ne.s32.totalorder %s266, %s269
      %p278 = scmp.eq.s32.totalorder %s36, 1
      %p279 = por %p277, %p278
      %p280 = scmp.ne.s32.totalorder %s269, %s270
      %p281 = scmp.eq.s32.totalorder %s36, 0
      %p282 = por %p280, %p281
      %p283 = scmp.ne.s32.totalorder %s269, %s270
      %p284 = scmp.eq.s32.totalorder %s37, 1
      %p285 = por %p283, %p284
      %p287 = scmp.ne.s32.totalorder %s270, %s286
      %p288 = scmp.eq.s32.totalorder %s37, 0
      %p289 = por %p287, %p288
      %p290 = scmp.le.s32.totalorder 1, %s31
      %p291 = scmp.lt.s32.totalorder %s31, 3
      %p292 = pnand %p290, %p291
      %p293 = pneg %p292
      // Predicated region
      $region9: #{tpu_custom_call.1} parent=5 // pred_check
        _
      $region10: #{tpu_custom_call.1} parent=5 // pred_check_branch
        %295 = sbr.rel (%p292) target = $region12
      $region11: #{tpu_custom_call.1} parent=5 // pred_region
        %s296 = ssub.s32 %s31, 1
        // Predicated region
        $region13: #{tpu_custom_call.1} parent=11 // pred_check
          %p297 = pneg %p104
        $region14: #{tpu_custom_call.1} parent=11 // pred_check_branch
          %299 = sbr.rel (%p297) target = $region16
        $region15: #{tpu_custom_call.1} parent=11 // pred_region
          %301 = vsyncadd [#allocation6], 0
          %s303 = sshll.u32 %s2, 4
          %s304 = int_to_ptr.hbm [resolvable:$true] %s303
          %s305 = sshll.u32 [#allocation7], 4
          %s306 = int_to_ptr.vmem [resolvable:$true] %s305
          %308 = dma.hbm_to_vmem [thread:$0]  %s304, 32, %s306, [#allocation6]
        $region16: #{tpu_custom_call.1} parent=11 // pred_fallthru
          _
        // Predicated region
        $region17: #{tpu_custom_call.1} parent=11 // pred_check
          %p309 = pneg %p125
        $region18: #{tpu_custom_call.1} parent=11 // pred_check_branch
          %311 = sbr.rel (%p309) target = $region20
        $region19: #{tpu_custom_call.1} parent=11 // pred_region
          _
        $region20: #{tpu_custom_call.1} parent=11 // pred_fallthru
          _
        // Predicated region
        $region21: #{tpu_custom_call.1} parent=11 // pred_check
          %p312 = pneg %p146
        $region22: #{tpu_custom_call.1} parent=11 // pred_check_branch
          %314 = sbr.rel (%p312) target = $region24
        $region23: #{tpu_custom_call.1} parent=11 // pred_region
          %316 = vsyncadd [#allocation9], 0
          %s318 = sshll.u32 %s4, 4
          %s319 = int_to_ptr.hbm [resolvable:$true] %s318
          %s320 = sshll.u32 [#allocation8], 4
          %s321 = int_to_ptr.vmem [resolvable:$true] %s320
          %323 = dma.hbm_to_vmem [thread:$0]  %s319, 32, %s321, [#allocation9]
        $region24: #{tpu_custom_call.1} parent=11 // pred_fallthru
          _
        // Predicated region
        $region25: #{tpu_custom_call.1} parent=11 // pred_check
          %p324 = pneg %p167
        $region26: #{tpu_custom_call.1} parent=11 // pred_check_branch
          %326 = sbr.rel (%p324) target = $region28
        $region27: #{tpu_custom_call.1} parent=11 // pred_region
          %328 = vsyncadd [#allocation9], 0
          %s329 = sshll.u32 %s5, 4
          %s330 = int_to_ptr.hbm [resolvable:$true] %s329
          %s331 = sshll.u32 [#allocation10], 4
          %s332 = int_to_ptr.vmem [resolvable:$true] %s331
          %337 = dma.hbm_to_vmem [thread:$0]  %s330, 512, %s332, [#allocation9], 128, 128, 8
        $region28: #{tpu_custom_call.1} parent=11 // pred_fallthru
          _
        // Predicated region
        $region29: #{tpu_custom_call.1} parent=11 // pred_check
          %p338 = pneg %p188
        $region30: #{tpu_custom_call.1} parent=11 // pred_check_branch
          %340 = sbr.rel (%p338) target = $region32
        $region31: #{tpu_custom_call.1} parent=11 // pred_region
          _
        $region32: #{tpu_custom_call.1} parent=11 // pred_fallthru
          _
        // Predicated region
        $region33: #{tpu_custom_call.1} parent=11 // pred_check
          %p341 = pneg %p209
        $region34: #{tpu_custom_call.1} parent=11 // pred_check_branch
          %343 = sbr.rel (%p341) target = $region36
        $region35: #{tpu_custom_call.1} parent=11 // pred_region
          %345 = vsyncadd [#allocation12], 0
          %s346 = sshll.u32 %s7, 4
          %s347 = int_to_ptr.hbm [resolvable:$true] %s346
          %s348 = sshll.u32 [#allocation11], 4
          %s349 = int_to_ptr.vmem [resolvable:$true] %s348
          %354 = dma.hbm_to_vmem [thread:$0]  %s347, 512, %s349, [#allocation12], 128, 128, 8
        $region36: #{tpu_custom_call.1} parent=11 // pred_fallthru
          _
        // Predicated region
        $region37: #{tpu_custom_call.1} parent=11 // pred_check
          %p355 = pneg %p230
        $region38: #{tpu_custom_call.1} parent=11 // pred_check_branch
          %357 = sbr.rel (%p355) target = $region40
        $region39: #{tpu_custom_call.1} parent=11 // pred_region
          _
        $region40: #{tpu_custom_call.1} parent=11 // pred_fallthru
          _
      $region12: #{tpu_custom_call.1} parent=5 // pred_fallthru
        _
      %p358 = scmp.lt.s32.totalorder %s31, 2
      // Predicated region
      $region41: #{tpu_custom_call.1} parent=5 // pred_check
        %p359 = pneg %p358
      $region42: #{tpu_custom_call.1} parent=5 // pred_check_branch
        %361 = sbr.rel (%p359) target = $region44
      $region43: #{tpu_custom_call.1} parent=5 // pred_region
        // Predicated region
        $region45: #{tpu_custom_call.1} parent=43 // pred_check
          %p362 = pneg %p51
        $region46: #{tpu_custom_call.1} parent=43 // pred_check_branch
          %364 = sbr.rel (%p362) target = $region48
        $region47: #{tpu_custom_call.1} parent=43 // pred_region
          %s365 = sand.u32 %s41, 1
          %s366 = scalar_lea.sflag [#allocation3], %s365
          %s367 = sand.u32 %s41, 1
          %s368 = smul.addr %s367, 16
          %s369 = scalar_lea.vmem [#allocation2], %s368
          %371 = vsyncadd %s366, 0
          %s372 = smul.addr %s31, 2
          %s373 = smul.addr %s372, 8
          %s374 = scalar_lea.hbm %s0, %s373
          %s375 = sshll.u32 %s374, 4
          %s376 = int_to_ptr.hbm [resolvable:$true] %s375
          %s377 = sshll.u32 %s369, 4
          %s378 = int_to_ptr.vmem [resolvable:$true] %s377
          %383 = dma.hbm_to_vmem [thread:$0]  %s376, 256, %s378, %s366, 128, 128, 8
        $region48: #{tpu_custom_call.1} parent=43 // pred_fallthru
          _
        // Predicated region
        $region49: #{tpu_custom_call.1} parent=43 // pred_check
          %p384 = pneg %p77
        $region50: #{tpu_custom_call.1} parent=43 // pred_check_branch
          %386 = sbr.rel (%p384) target = $region52
        $region51: #{tpu_custom_call.1} parent=43 // pred_region
          %s387 = sand.u32 %s31, 1
          %s388 = scalar_lea.sflag [#allocation6], %s387
          %s389 = sand.u32 %s67, 1
          %s390 = smul.addr %s389, 16
          %s391 = scalar_lea.vmem [#allocation5], %s390
          %393 = vsyncadd %s388, 0
          %s394 = smul.addr %s31, 2
          %s395 = smul.addr %s394, 8
          %s396 = scalar_lea.hbm %s1, %s395
          %s397 = sshll.u32 %s396, 4
          %s398 = int_to_ptr.hbm [resolvable:$true] %s397
          %s399 = sshll.u32 %s391, 4
          %s400 = int_to_ptr.vmem [resolvable:$true] %s399
          %405 = dma.hbm_to_vmem [thread:$0]  %s398, 256, %s400, %s388, 128, 128, 8
        $region52: #{tpu_custom_call.1} parent=43 // pred_fallthru
          _
      $region44: #{tpu_custom_call.1} parent=5 // pred_fallthru
        _
      %p406 = scmp.le.s32.totalorder 1, %s31
      %p407 = scmp.lt.s32.totalorder %s31, 3
      %p408 = pnand %p406, %p407
      %p409 = pneg %p408
      // Predicated region
      $region53: #{tpu_custom_call.1} parent=5 // pred_check
        _
      $region54: #{tpu_custom_call.1} parent=5 // pred_check_branch
        %411 = sbr.rel (%p408) target = $region56
      $region55: #{tpu_custom_call.1} parent=5 // pred_region
        %s412 = ssub.s32 %s31, 1
        %s413 = sand.u32 %s44, 1
        %s414 = scalar_lea.sflag [#allocation3], %s413
        %s415 = sand.u32 %s44, 1
        %s416 = smul.addr %s415, 16
        %s417 = scalar_lea.vmem [#allocation2], %s416
        // Predicated region
        $region57: #{tpu_custom_call.1} parent=55 // pred_check
          %p418 = pneg %p57
        $region58: #{tpu_custom_call.1} parent=55 // pred_check_branch
          %420 = sbr.rel (%p418) target = $region60
        $region59: #{tpu_custom_call.1} parent=55 // pred_region
          %422 = dma.done %s414, 256
        $region60: #{tpu_custom_call.1} parent=55 // pred_fallthru
          _
        %s423 = sand.u32 %s36, 1
        %s424 = scalar_lea.sflag [#allocation6], %s423
        %s425 = sand.u32 %s70, 1
        %s426 = smul.addr %s425, 16
        %s427 = scalar_lea.vmem [#allocation5], %s426
        // Predicated region
        $region61: #{tpu_custom_call.1} parent=55 // pred_check
          %p428 = pneg %p83
        $region62: #{tpu_custom_call.1} parent=55 // pred_check_branch
          %430 = sbr.rel (%p428) target = $region64
        $region63: #{tpu_custom_call.1} parent=55 // pred_region
          %432 = dma.done %s424, 256
        $region64: #{tpu_custom_call.1} parent=55 // pred_fallthru
          _
        // Predicated region
        $region65: #{tpu_custom_call.1} parent=55 // pred_check
          %p433 = pneg %p104
        $region66: #{tpu_custom_call.1} parent=55 // pred_check_branch
          %435 = sbr.rel (%p433) target = $region68
        $region67: #{tpu_custom_call.1} parent=55 // pred_region
          %437 = dma.done [#allocation6], 32
        $region68: #{tpu_custom_call.1} parent=55 // pred_fallthru
          _
        // Predicated region
        $region69: #{tpu_custom_call.1} parent=55 // pred_check
          %p438 = pneg %p146
        $region70: #{tpu_custom_call.1} parent=55 // pred_check_branch
          %440 = sbr.rel (%p438) target = $region72
        $region71: #{tpu_custom_call.1} parent=55 // pred_region
          %442 = dma.done [#allocation9], 32
        $region72: #{tpu_custom_call.1} parent=55 // pred_fallthru
          _
        // Predicated region
        $region73: #{tpu_custom_call.1} parent=55 // pred_check
          %p443 = pneg %p167
        $region74: #{tpu_custom_call.1} parent=55 // pred_check_branch
          %445 = sbr.rel (%p443) target = $region76
        $region75: #{tpu_custom_call.1} parent=55 // pred_region
          %447 = dma.done [#allocation9], 512
        $region76: #{tpu_custom_call.1} parent=55 // pred_fallthru
          _
        // Predicated region
        $region77: #{tpu_custom_call.1} parent=55 // pred_check
          %p448 = pneg %p209
        $region78: #{tpu_custom_call.1} parent=55 // pred_check_branch
          %450 = sbr.rel (%p448) target = $region80
        $region79: #{tpu_custom_call.1} parent=55 // pred_region
          %452 = dma.done [#allocation12], 512
        $region80: #{tpu_custom_call.1} parent=55 // pred_fallthru
          _
        %s453 = sand.u32 %s44, 1
        %s454 = scalar_lea.sflag [#allocation3], %s453
        %s455 = sand.u32 %s44, 1
        %s456 = smul.addr %s455, 16
        %s457 = scalar_lea.vmem [#allocation2], %s456
        %p458 = pneg %p57
        %p459 = pneg %p54
        %s460 = sand.u32 %s36, 1
        %s461 = scalar_lea.sflag [#allocation6], %s460
        %s462 = sand.u32 %s70, 1
        %s463 = smul.addr %s462, 16
        %s464 = scalar_lea.vmem [#allocation5], %s463
        %p465 = pneg %p83
        %p466 = pneg %p80
        %p467 = pneg %p104
        %p468 = pneg %p101
        %p469 = pneg %p125
        %p470 = pneg %p122
        %p471 = pneg %p146
        %p472 = pneg %p143
        %p473 = pneg %p167
        %p474 = pneg %p164
        %p475 = pneg %p188
        %p476 = pneg %p185
        %p477 = pneg %p209
        %p478 = pneg %p206
        %p479 = pneg %p230
        %p480 = pneg %p227
        %p481 = pneg %p256
        %p482 = pneg %p253
        %s483 = sand.u32 %s243, 1
        %s484 = scalar_lea.sflag [#allocation4], %s483
        %s485 = sand.u32 %s243, 1
        %s486 = smul.addr %s485, 16
        %s487 = scalar_lea.vmem [#allocation13], %s486
        %p488 = pneg %p282
        %p489 = pneg %p279
        %s490 = sand.u32 %s269, 1
        %s491 = scalar_lea.sflag [#allocation15], %s490
        %s492 = sand.u32 %s269, 1
        %s493 = smul.addr %s492, 16
        %s494 = scalar_lea.vmem [#allocation14], %s493
        %v495 = vld [vmem:[%s417] sm:$0xff]
        %v496 = vld [vmem:[%s417 + $0x8] sm:$0xff]
        %v497 = vld [vmem:[%s427] sm:$0xff]
        %v498 = vld [vmem:[%s427 + $0x8] sm:$0xff]
        %v499 = vld [vmem:[#allocation7] sm:$0x1]
        %v500 = vperm.slane %v499, 0
        %v501 = vmul.f32 %v495, %v500
        %v502 = vmul.f32 %v496, %v500
        %v503 = vmul.f32 %v501, %v501
        %v504 = vmul.f32 %v502, %v502
        %vm505 = vcmask 261120
        %v506 = vsel %vm505, %v503, 0.0
        %507 = vadd.xlane.f32.xlu0 %v506
        %v508 = vpop.xlane.xlu0 %507
        %v509 = vsel %vm505, %v504, 0.0
        %510 = vadd.xlane.f32.xlu0 %v509
        %v511 = vpop.xlane.xlu0 %510
        %v512 = vmax.f32 %v508, 1e-24
        %v513 = vmax.f32 %v511, 1e-24
        %v514 = vrsqrt.pop %v512
        %v515 = vmul.f32 %v514, %v512
        %v516 = vmul.f32 %v515, %v514
        %v517 = vmul.f32 0.5, %v516
        %v518 = vsub.f32 1.5, %v517
        %v519 = vmul.f32 %v514, %v518
        %vm520 = vweird.f32 %v512
        %vm521 = vweird.f32 %v514
        %vm522 = vmor %vm520, %vm521
        %v523 = vsel %vm522, %v514, %v519
        %v524 = vrsqrt.pop %v513
        %v525 = vmul.f32 %v524, %v513
        %v526 = vmul.f32 %v525, %v524
        %v527 = vmul.f32 0.5, %v526
        %v528 = vsub.f32 1.5, %v527
        %v529 = vmul.f32 %v524, %v528
        %vm530 = vweird.f32 %v513
        %vm531 = vweird.f32 %v524
        %vm532 = vmor %vm530, %vm531
        %v533 = vsel %vm532, %v524, %v529
        %v534 = vmul.f32 %v501, %v523
        %v535 = vmul.f32 %v502, %v533
        %v536 = vld [vmem:[#allocation7 + $0x1] sm:$0x1]
        %v537 = vperm.slane %v536, 0
        %v538 = vmul.f32 %v495, %v537
        %v539 = vmul.f32 %v496, %v537
        %v540 = vmul.f32 %v538, %v538
        %v541 = vmul.f32 %v539, %v539
        %v542 = vsel %vm505, %v540, 0.0
        %543 = vadd.xlane.f32.xlu0 %v542
        %v544 = vpop.xlane.xlu0 %543
        %v545 = vsel %vm505, %v541, 0.0
        %546 = vadd.xlane.f32.xlu0 %v545
        %v547 = vpop.xlane.xlu0 %546
        %v548 = vmax.f32 %v544, 1e-24
        %v549 = vmax.f32 %v547, 1e-24
        %v550 = vrsqrt.pop %v548
        %v551 = vmul.f32 %v550, %v548
        %v552 = vmul.f32 %v551, %v550
        %v553 = vmul.f32 0.5, %v552
        %v554 = vsub.f32 1.5, %v553
        %v555 = vmul.f32 %v550, %v554
        %vm556 = vweird.f32 %v548
        %vm557 = vweird.f32 %v550
        %vm558 = vmor %vm556, %vm557
        %v559 = vsel %vm558, %v550, %v555
        %v560 = vrsqrt.pop %v549
        %v561 = vmul.f32 %v560, %v549
        %v562 = vmul.f32 %v561, %v560
        %v563 = vmul.f32 0.5, %v562
        %v564 = vsub.f32 1.5, %v563
        %v565 = vmul.f32 %v560, %v564
        %vm566 = vweird.f32 %v549
        %vm567 = vweird.f32 %v560
        %vm568 = vmor %vm566, %vm567
        %v569 = vsel %vm568, %v560, %v565
        %v570 = vmul.f32 %v538, %v559
        %v571 = vmul.f32 %v539, %v569
        %574 = vrot.lane.b32.xlu0 %v570, 32
        %v575 = vpop.permute.xlu0 %574
        %576 = vrot.lane.b32.xlu0 %v571, 32
        %v577 = vpop.permute.xlu0 %576
        %v580 = vsel %vm505, %v534, %v575
        %v581 = vsel %vm505, %v535, %v577
        %vm582 = vcmask 523264
        %v584 = vsel %vm582, %v580, 0
        %v587 = vsel %vm582, %v581, 0
        %589 = vmatpush.xpose.msra.mxu0 0.0
        %590 = vmatpush.xpose.msra.mxu0 0.0
        %591 = vmatpush.xpose.msra.mxu0 0.0
        %592 = vmatpush.xpose.msra.mxu0 0.0
        %593 = vmatpush.xpose.msra.mxu0 0.0
        %594 = vmatpush.xpose.msra.mxu0 0.0
        %595 = vmatpush.xpose.msra.mxu0 0.0
        %596 = vmatpush.xpose.msra.mxu0 0.0
        %597 = vmatpush.xpose.msra.mxu0 0.0
        %598 = vmatpush.xpose.msra.mxu0 0.0
        %599 = vmatpush.xpose.msra.mxu0 0.0
        %600 = vmatpush.xpose.msra.mxu0 0.0
        %601 = vmatpush.xpose.msra.mxu0 0.0
        %602 = vmatpush.xpose.msra.mxu0 0.0
        %603 = vmatpush.xpose.msra.mxu0 %v587
        %604 = vmatpush.xpose.msra.mxu0 %v584
        %605 = vmatmul.f32.gmra.mxu0 %v584
        %v606 = vpop.f32.mrf.mxu0
        %v607 = vadd.f32 0.0, %v606
        %608 = vmatmul.f32.gmra.mxu0 %v587
        %v609 = vpop.f32.mrf.mxu0
        %v610 = vadd.f32 0.0, %v609
        %611 = vdwg.mxu0
        %v612 = vmul.f32 %v607, 0.5
        %v613 = vmul.f32 %v610, 0.5
        %v614 = vmax.f32 %v612, 0.0
        %v615 = vmax.f32 %v613, 0.0
        %v616 = vmul.f32 %v614, 0.8
        %v617 = vmul.f32 %v615, 0.8
        %v618 = vmul.f32 %v497, 0.2
        %v619 = vmul.f32 %v498, 0.2
        %v620 = vadd.f32 %v616, %v618
        %v621 = vadd.f32 %v617, %v619
        %v622 = vld [vmem:[#allocation10] sm:$0xff]
        %v623 = vld [vmem:[#allocation10 + $0x8] sm:$0xff]
        %v624 = vld [vmem:[#allocation10 + $0x10] sm:$0xff]
        %v625 = vld [vmem:[#allocation10 + $0x18] sm:$0xff]
        %v626 = vld [vmem:[%s6] sm:$0x1]
        %v628 = vperm.slane %v626, 0
        %v631 = vsel %vm505, %v495, 0
        %v634 = vsel %vm505, %v496, 0
        %636 = vmatpush.msra.mxu0 0.0
        %637 = vmatpush.msra.mxu0 0.0
        %638 = vmatpush.msra.mxu0 0.0
        %639 = vmatpush.msra.mxu0 0.0
        %640 = vmatpush.msra.mxu0 0.0
        %641 = vmatpush.msra.mxu0 0.0
        %642 = vmatpush.msra.mxu0 0.0
        %643 = vmatpush.msra.mxu0 0.0
        %644 = vmatpush.msra.mxu0 0.0
        %645 = vmatpush.msra.mxu0 0.0
        %646 = vmatpush.msra.mxu0 0.0
        %647 = vmatpush.msra.mxu0 0.0
        %648 = vmatpush.msra.mxu0 %v625
        %649 = vmatpush.msra.mxu0 %v624
        %650 = vmatpush.msra.mxu0 %v623
        %651 = vmatpush.msra.mxu0 %v622
        %652 = vmatmul.f32.gmra.mxu0 %v631
        %v653 = vpop.f32.mrf.mxu0
        %v654 = vadd.f32 %v628, %v653
        %655 = vmatmul.f32.gmra.mxu0 %v634
        %v656 = vpop.f32.mrf.mxu0
        %v657 = vadd.f32 %v628, %v656
        %658 = vdwg.mxu0
        %v659 = vmax.f32 %v654, 0.0
        %v660 = vmax.f32 %v657, 0.0
        %v661 = vld [vmem:[#allocation11] sm:$0xff]
        %v662 = vld [vmem:[#allocation11 + $0x8] sm:$0xff]
        %v663 = vld [vmem:[#allocation11 + $0x10] sm:$0xff]
        %v664 = vld [vmem:[#allocation11 + $0x18] sm:$0xff]
        %v665 = vld [vmem:[%s8] sm:$0x1]
        %v667 = vperm.slane %v665, 0
        %v670 = vsel %vm505, %v659, 0
        %v673 = vsel %vm505, %v660, 0
        %675 = vmatpush.msra.mxu0 0.0
        %676 = vmatpush.msra.mxu0 0.0
        %677 = vmatpush.msra.mxu0 0.0
        %678 = vmatpush.msra.mxu0 0.0
        %679 = vmatpush.msra.mxu0 0.0
        %680 = vmatpush.msra.mxu0 0.0
        %681 = vmatpush.msra.mxu0 0.0
        %682 = vmatpush.msra.mxu0 0.0
        %683 = vmatpush.msra.mxu0 0.0
        %684 = vmatpush.msra.mxu0 0.0
        %685 = vmatpush.msra.mxu0 0.0
        %686 = vmatpush.msra.mxu0 0.0
        %687 = vmatpush.msra.mxu0 %v664
        %688 = vmatpush.msra.mxu0 %v663
        %689 = vmatpush.msra.mxu0 %v662
        %690 = vmatpush.msra.mxu0 %v661
        %691 = vmatmul.f32.gmra.mxu0 %v670
        %v692 = vpop.f32.mrf.mxu0
        %v693 = vadd.f32 %v667, %v692
        %694 = vmatmul.f32.gmra.mxu0 %v673
        %v695 = vpop.f32.mrf.mxu0
        %v696 = vadd.f32 %v667, %v695
        %697 = vdwg.mxu0
        %v698 = vmul.f32 %v620, 0.9
        %v699 = vmul.f32 %v621, 0.9
        %vm700 = vcmask 130048
        %v701 = vsel %vm700, %v698, 0.0
        %v702 = vsel %vm700, %v699, 0.0
        %v703 = vmul.f32 %v497, 0.9
        %v704 = vmul.f32 %v498, 0.9
        %707 = vrot.lane.b32.xlu0 %v703, 16
        %v708 = vpop.permute.xlu0 %707
        %709 = vrot.lane.b32.xlu0 %v704, 16
        %v710 = vpop.permute.xlu0 %709
        %v713 = vsel %vm700, 0.0, %v708
        %v714 = vsel %vm700, 0.0, %v710
        %v715 = vmul.f32 %v693, 0.1
        %v716 = vmul.f32 %v696, 0.1
        %v718 = vsel %vm505, %v701, 0
        %v721 = vsel %vm505, %v702, 0
        %v724 = vsel %vm505, %v713, 0
        %v727 = vsel %vm505, %v714, 0
        %729 = vmatpush.msra.mxu0 0.0
        %730 = vmatpush.msra.mxu0 0.0
        %731 = vmatpush.msra.mxu0 0.0
        %732 = vmatpush.msra.mxu0 0.0
        %733 = vmatpush.msra.mxu0 0.0
        %734 = vmatpush.msra.mxu0 0.0
        %735 = vmatpush.msra.mxu0 0.0
        %736 = vmatpush.msra.mxu0 0.0
        %737 = vmatpush.msra.mxu0 0.0
        %738 = vmatpush.msra.mxu0 0.0
        %739 = vmatpush.msra.mxu0 0.0
        %740 = vmatpush.msra.mxu0 0.0
        %741 = vmatpush.msra.mxu0 %v696
        %742 = vmatpush.msra.mxu0 %v693
        %743 = vmatpush.msra.mxu0 %v696
        %744 = vmatpush.msra.mxu0 %v693
        %745 = vmatmul.f32.gmra.mxu0 %v718
        %v746 = vpop.f32.mrf.mxu0
        %v747 = vadd.f32 %v715, %v746
        %748 = vmatmul.f32.gmra.mxu0 %v721
        %v749 = vpop.f32.mrf.mxu0
        %v750 = vadd.f32 %v716, %v749
        %751 = vmatmul.f32.gmra.mxu0 %v724
        %v752 = vpop.f32.mrf.mxu0
        %v753 = vadd.f32 %v715, %v752
        %754 = vmatmul.f32.gmra.mxu0 %v727
        %v755 = vpop.f32.mrf.mxu0
        %v756 = vadd.f32 %v716, %v755
        %757 = vdwg.mxu0
        %758 = vmatpush.msra.mxu0 0.0
        %759 = vmatpush.msra.mxu0 0.0
        %760 = vmatpush.msra.mxu0 0.0
        %761 = vmatpush.msra.mxu0 0.0
        %762 = vmatpush.msra.mxu0 0.0
        %763 = vmatpush.msra.mxu0 0.0
        %764 = vmatpush.msra.mxu0 0.0
        %765 = vmatpush.msra.mxu0 0.0
        %766 = vmatpush.msra.mxu0 0.0
        %767 = vmatpush.msra.mxu0 0.0
        %768 = vmatpush.msra.mxu0 0.0
        %769 = vmatpush.msra.mxu0 0.0
        %770 = vmatpush.msra.mxu0 %v756
        %771 = vmatpush.msra.mxu0 %v753
        %772 = vmatpush.msra.mxu0 %v750
        %773 = vmatpush.msra.mxu0 %v747
        %774 = vmatmul.f32.gmra.mxu0 %v718
        %v775 = vpop.f32.mrf.mxu0
        %v776 = vadd.f32 %v715, %v775
        %777 = vmatmul.f32.gmra.mxu0 %v721
        %v778 = vpop.f32.mrf.mxu0
        %v779 = vadd.f32 %v716, %v778
        %780 = vmatmul.f32.gmra.mxu0 %v724
        %v781 = vpop.f32.mrf.mxu0
        %v782 = vadd.f32 %v715, %v781
        %783 = vmatmul.f32.gmra.mxu0 %v727
        %v784 = vpop.f32.mrf.mxu0
        %v785 = vadd.f32 %v716, %v784
        %786 = vdwg.mxu0
        %787 = vmatpush.msra.mxu0 0.0
        %788 = vmatpush.msra.mxu0 0.0
        %789 = vmatpush.msra.mxu0 0.0
        %790 = vmatpush.msra.mxu0 0.0
        %791 = vmatpush.msra.mxu0 0.0
        %792 = vmatpush.msra.mxu0 0.0
        %793 = vmatpush.msra.mxu0 0.0
        %794 = vmatpush.msra.mxu0 0.0
        %795 = vmatpush.msra.mxu0 0.0
        %796 = vmatpush.msra.mxu0 0.0
        %797 = vmatpush.msra.mxu0 0.0
        %798 = vmatpush.msra.mxu0 0.0
        %799 = vmatpush.msra.mxu0 %v785
        %800 = vmatpush.msra.mxu0 %v782
        %801 = vmatpush.msra.mxu0 %v779
        %802 = vmatpush.msra.mxu0 %v776
        %803 = vmatmul.f32.gmra.mxu0 %v718
        %v804 = vpop.f32.mrf.mxu0
        %v805 = vadd.f32 %v715, %v804
        %806 = vmatmul.f32.gmra.mxu0 %v721
        %v807 = vpop.f32.mrf.mxu0
        %v808 = vadd.f32 %v716, %v807
        %809 = vmatmul.f32.gmra.mxu0 %v724
        %v810 = vpop.f32.mrf.mxu0
        %v811 = vadd.f32 %v715, %v810
        %812 = vmatmul.f32.gmra.mxu0 %v727
        %v813 = vpop.f32.mrf.mxu0
        %v814 = vadd.f32 %v716, %v813
        %815 = vdwg.mxu0
        %816 = vmatpush.msra.mxu0 0.0
        %817 = vmatpush.msra.mxu0 0.0
        %818 = vmatpush.msra.mxu0 0.0
        %819 = vmatpush.msra.mxu0 0.0
        %820 = vmatpush.msra.mxu0 0.0
        %821 = vmatpush.msra.mxu0 0.0
        %822 = vmatpush.msra.mxu0 0.0
        %823 = vmatpush.msra.mxu0 0.0
        %824 = vmatpush.msra.mxu0 0.0
        %825 = vmatpush.msra.mxu0 0.0
        %826 = vmatpush.msra.mxu0 0.0
        %827 = vmatpush.msra.mxu0 0.0
        %828 = vmatpush.msra.mxu0 %v814
        %829 = vmatpush.msra.mxu0 %v811
        %830 = vmatpush.msra.mxu0 %v808
        %831 = vmatpush.msra.mxu0 %v805
        %832 = vmatmul.f32.gmra.mxu0 %v718
        %v833 = vpop.f32.mrf.mxu0
        %v834 = vadd.f32 %v715, %v833
        %835 = vmatmul.f32.gmra.mxu0 %v721
        %v836 = vpop.f32.mrf.mxu0
        %v837 = vadd.f32 %v716, %v836
        %838 = vmatmul.f32.gmra.mxu0 %v724
        %v839 = vpop.f32.mrf.mxu0
        %v840 = vadd.f32 %v715, %v839
        %841 = vmatmul.f32.gmra.mxu0 %v727
        %v842 = vpop.f32.mrf.mxu0
        %v843 = vadd.f32 %v716, %v842
        %844 = vdwg.mxu0
        %845 = vmatpush.msra.mxu0 0.0
        %846 = vmatpush.msra.mxu0 0.0
        %847 = vmatpush.msra.mxu0 0.0
        %848 = vmatpush.msra.mxu0 0.0
        %849 = vmatpush.msra.mxu0 0.0
        %850 = vmatpush.msra.mxu0 0.0
        %851 = vmatpush.msra.mxu0 0.0
        %852 = vmatpush.msra.mxu0 0.0
        %853 = vmatpush.msra.mxu0 0.0
        %854 = vmatpush.msra.mxu0 0.0
        %855 = vmatpush.msra.mxu0 0.0
        %856 = vmatpush.msra.mxu0 0.0
        %857 = vmatpush.msra.mxu0 %v843
        %858 = vmatpush.msra.mxu0 %v840
        %859 = vmatpush.msra.mxu0 %v837
        %860 = vmatpush.msra.mxu0 %v834
        %861 = vmatmul.f32.gmra.mxu0 %v718
        %v862 = vpop.f32.mrf.mxu0
        %v863 = vadd.f32 %v715, %v862
        %864 = vmatmul.f32.gmra.mxu0 %v721
        %v865 = vpop.f32.mrf.mxu0
        %v866 = vadd.f32 %v716, %v865
        %867 = vmatmul.f32.gmra.mxu0 %v724
        %v868 = vpop.f32.mrf.mxu0
        %v869 = vadd.f32 %v715, %v868
        %870 = vmatmul.f32.gmra.mxu0 %v727
        %v871 = vpop.f32.mrf.mxu0
        %v872 = vadd.f32 %v716, %v871
        %873 = vdwg.mxu0
        %874 = vmatpush.msra.mxu0 0.0
        %875 = vmatpush.msra.mxu0 0.0
        %876 = vmatpush.msra.mxu0 0.0
        %877 = vmatpush.msra.mxu0 0.0
        %878 = vmatpush.msra.mxu0 0.0
        %879 = vmatpush.msra.mxu0 0.0
        %880 = vmatpush.msra.mxu0 0.0
        %881 = vmatpush.msra.mxu0 0.0
        %882 = vmatpush.msra.mxu0 0.0
        %883 = vmatpush.msra.mxu0 0.0
        %884 = vmatpush.msra.mxu0 0.0
        %885 = vmatpush.msra.mxu0 0.0
        %886 = vmatpush.msra.mxu0 %v872
        %887 = vmatpush.msra.mxu0 %v869
        %888 = vmatpush.msra.mxu0 %v866
        %889 = vmatpush.msra.mxu0 %v863
        %890 = vmatmul.f32.gmra.mxu0 %v718
        %v891 = vpop.f32.mrf.mxu0
        %v892 = vadd.f32 %v715, %v891
        %893 = vmatmul.f32.gmra.mxu0 %v721
        %v894 = vpop.f32.mrf.mxu0
        %v895 = vadd.f32 %v716, %v894
        %896 = vmatmul.f32.gmra.mxu0 %v724
        %v897 = vpop.f32.mrf.mxu0
        %v898 = vadd.f32 %v715, %v897
        %899 = vmatmul.f32.gmra.mxu0 %v727
        %v900 = vpop.f32.mrf.mxu0
        %v901 = vadd.f32 %v716, %v900
        %902 = vdwg.mxu0
        %903 = vmatpush.msra.mxu0 0.0
        %904 = vmatpush.msra.mxu0 0.0
        %905 = vmatpush.msra.mxu0 0.0
        %906 = vmatpush.msra.mxu0 0.0
        %907 = vmatpush.msra.mxu0 0.0
        %908 = vmatpush.msra.mxu0 0.0
        %909 = vmatpush.msra.mxu0 0.0
        %910 = vmatpush.msra.mxu0 0.0
        %911 = vmatpush.msra.mxu0 0.0
        %912 = vmatpush.msra.mxu0 0.0
        %913 = vmatpush.msra.mxu0 0.0
        %914 = vmatpush.msra.mxu0 0.0
        %915 = vmatpush.msra.mxu0 %v901
        %916 = vmatpush.msra.mxu0 %v898
        %917 = vmatpush.msra.mxu0 %v895
        %918 = vmatpush.msra.mxu0 %v892
        %919 = vmatmul.f32.gmra.mxu0 %v718
        %v920 = vpop.f32.mrf.mxu0
        %v921 = vadd.f32 %v715, %v920
        %922 = vmatmul.f32.gmra.mxu0 %v721
        %v923 = vpop.f32.mrf.mxu0
        %v924 = vadd.f32 %v716, %v923
        %925 = vmatmul.f32.gmra.mxu0 %v724
        %v926 = vpop.f32.mrf.mxu0
        %v927 = vadd.f32 %v715, %v926
        %928 = vmatmul.f32.gmra.mxu0 %v727
        %v929 = vpop.f32.mrf.mxu0
        %v930 = vadd.f32 %v716, %v929
        %931 = vdwg.mxu0
        %932 = vmatpush.msra.mxu0 0.0
        %933 = vmatpush.msra.mxu0 0.0
        %934 = vmatpush.msra.mxu0 0.0
        %935 = vmatpush.msra.mxu0 0.0
        %936 = vmatpush.msra.mxu0 0.0
        %937 = vmatpush.msra.mxu0 0.0
        %938 = vmatpush.msra.mxu0 0.0
        %939 = vmatpush.msra.mxu0 0.0
        %940 = vmatpush.msra.mxu0 0.0
        %941 = vmatpush.msra.mxu0 0.0
        %942 = vmatpush.msra.mxu0 0.0
        %943 = vmatpush.msra.mxu0 0.0
        %944 = vmatpush.msra.mxu0 %v930
        %945 = vmatpush.msra.mxu0 %v927
        %946 = vmatpush.msra.mxu0 %v924
        %947 = vmatpush.msra.mxu0 %v921
        %948 = vmatmul.f32.gmra.mxu0 %v718
        %v949 = vpop.f32.mrf.mxu0
        %v950 = vadd.f32 %v715, %v949
        %951 = vmatmul.f32.gmra.mxu0 %v721
        %v952 = vpop.f32.mrf.mxu0
        %v953 = vadd.f32 %v716, %v952
        %954 = vmatmul.f32.gmra.mxu0 %v724
        %v955 = vpop.f32.mrf.mxu0
        %v956 = vadd.f32 %v715, %v955
        %957 = vmatmul.f32.gmra.mxu0 %v727
        %v958 = vpop.f32.mrf.mxu0
        %v959 = vadd.f32 %v716, %v958
        %960 = vdwg.mxu0
        %961 = vmatpush.msra.mxu0 0.0
        %962 = vmatpush.msra.mxu0 0.0
        %963 = vmatpush.msra.mxu0 0.0
        %964 = vmatpush.msra.mxu0 0.0
        %965 = vmatpush.msra.mxu0 0.0
        %966 = vmatpush.msra.mxu0 0.0
        %967 = vmatpush.msra.mxu0 0.0
        %968 = vmatpush.msra.mxu0 0.0
        %969 = vmatpush.msra.mxu0 0.0
        %970 = vmatpush.msra.mxu0 0.0
        %971 = vmatpush.msra.mxu0 0.0
        %972 = vmatpush.msra.mxu0 0.0
        %973 = vmatpush.msra.mxu0 %v959
        %974 = vmatpush.msra.mxu0 %v956
        %975 = vmatpush.msra.mxu0 %v953
        %976 = vmatpush.msra.mxu0 %v950
        %977 = vmatmul.f32.gmra.mxu0 %v718
        %v978 = vpop.f32.mrf.mxu0
        %v979 = vadd.f32 %v715, %v978
        %980 = vmatmul.f32.gmra.mxu0 %v721
        %v981 = vpop.f32.mrf.mxu0
        %v982 = vadd.f32 %v716, %v981
        %983 = vmatmul.f32.gmra.mxu0 %v724
        %v984 = vpop.f32.mrf.mxu0
        %v985 = vadd.f32 %v715, %v984
        %986 = vmatmul.f32.gmra.mxu0 %v727
        %v987 = vpop.f32.mrf.mxu0
        %v988 = vadd.f32 %v716, %v987
        %989 = vdwg.mxu0
        %990 = vmatpush.msra.mxu0 0.0
        %991 = vmatpush.msra.mxu0 0.0
        %992 = vmatpush.msra.mxu0 0.0
        %993 = vmatpush.msra.mxu0 0.0
        %994 = vmatpush.msra.mxu0 0.0
        %995 = vmatpush.msra.mxu0 0.0
        %996 = vmatpush.msra.mxu0 0.0
        %997 = vmatpush.msra.mxu0 0.0
        %998 = vmatpush.msra.mxu0 0.0
        %999 = vmatpush.msra.mxu0 0.0
        %1000 = vmatpush.msra.mxu0 0.0
        %1001 = vmatpush.msra.mxu0 0.0
        %1002 = vmatpush.msra.mxu0 %v988
        %1003 = vmatpush.msra.mxu0 %v985
        %1004 = vmatpush.msra.mxu0 %v982
        %1005 = vmatpush.msra.mxu0 %v979
        %1006 = vmatmul.f32.gmra.mxu0 %v718
        %v1007 = vpop.f32.mrf.mxu0
        %v1008 = vadd.f32 %v715, %v1007
        %1009 = vmatmul.f32.gmra.mxu0 %v721
        %v1010 = vpop.f32.mrf.mxu0
        %v1011 = vadd.f32 %v716, %v1010
        %1012 = vmatmul.f32.gmra.mxu0 %v724
        %v1013 = vpop.f32.mrf.mxu0
        %v1014 = vadd.f32 %v715, %v1013
        %1015 = vmatmul.f32.gmra.mxu0 %v727
        %v1016 = vpop.f32.mrf.mxu0
        %v1017 = vadd.f32 %v716, %v1016
        %1018 = vdwg.mxu0
        %v1019 = vmul.f32 %v1008, 0.1
        %v1020 = vmul.f32 %v1011, 0.1
        %v1021 = vmul.f32 %v1014, 0.1
        %v1022 = vmul.f32 %v1017, 0.1
        %v1023 = vld [vmem:[%s3] sm:$0x1]
        %v1024 = vperm.slane %v1023, 0
        %v1025 = vmul.f32 %v1019, %v1024
        %v1026 = vmul.f32 %v1020, %v1024
        %v1027 = vld [vmem:[#allocation8] sm:$0x1]
        %v1028 = vperm.slane %v1027, 0
        %v1029 = vmul.f32 %v1021, %v1028
        %v1030 = vmul.f32 %v1022, %v1028
        %v1031 = vmul.f32 %v1025, %v1025
        %v1032 = vmul.f32 %v1026, %v1026
        %v1033 = vsel %vm505, %v1031, 0.0
        %1034 = vadd.xlane.f32.xlu0 %v1033
        %v1035 = vpop.xlane.xlu0 %1034
        %v1036 = vsel %vm505, %v1032, 0.0
        %1037 = vadd.xlane.f32.xlu0 %v1036
        %v1038 = vpop.xlane.xlu0 %1037
        %v1039 = vmul.f32 %v1029, %v1029
        %v1040 = vmul.f32 %v1030, %v1030
        %v1041 = vsel %vm505, %v1039, 0.0
        %1042 = vadd.xlane.f32.xlu0 %v1041
        %v1043 = vpop.xlane.xlu0 %1042
        %v1044 = vsel %vm505, %v1040, 0.0
        %1045 = vadd.xlane.f32.xlu0 %v1044
        %v1046 = vpop.xlane.xlu0 %1045
        %v1047 = vadd.f32 %v1035, %v1043
        %v1048 = vadd.f32 %v1038, %v1046
        %v1049 = vmax.f32 %v1047, 1e-24
        %v1050 = vmax.f32 %v1048, 1e-24
        %v1051 = vrsqrt.pop %v1049
        %v1052 = vmul.f32 %v1051, %v1049
        %v1053 = vmul.f32 %v1052, %v1051
        %v1054 = vmul.f32 0.5, %v1053
        %v1055 = vsub.f32 1.5, %v1054
        %v1056 = vmul.f32 %v1051, %v1055
        %vm1057 = vweird.f32 %v1049
        %vm1058 = vweird.f32 %v1051
        %vm1059 = vmor %vm1057, %vm1058
        %v1060 = vsel %vm1059, %v1051, %v1056
        %v1061 = vrsqrt.pop %v1050
        %v1062 = vmul.f32 %v1061, %v1050
        %v1063 = vmul.f32 %v1062, %v1061
        %v1064 = vmul.f32 0.5, %v1063
        %v1065 = vsub.f32 1.5, %v1064
        %v1066 = vmul.f32 %v1061, %v1065
        %vm1067 = vweird.f32 %v1050
        %vm1068 = vweird.f32 %v1061
        %vm1069 = vmor %vm1067, %vm1068
        %v1070 = vsel %vm1069, %v1061, %v1066
        %v1071 = vmul.f32 %v1025, %v1060
        %v1072 = vmul.f32 %v1026, %v1070
        %v1073 = vmul.f32 %v1029, %v1060
        %v1074 = vmul.f32 %v1030, %v1070
        %v1075 = vld [vmem:[%s3 + $0x1] sm:$0x1]
        %v1076 = vperm.slane %v1075, 0
        %v1077 = vmul.f32 %v1019, %v1076
        %v1078 = vmul.f32 %v1020, %v1076
        %v1079 = vld [vmem:[#allocation8 + $0x1] sm:$0x1]
        %v1080 = vperm.slane %v1079, 0
        %v1081 = vmul.f32 %v1021, %v1080
        %v1082 = vmul.f32 %v1022, %v1080
        %v1083 = vmul.f32 %v1077, %v1077
        %v1084 = vmul.f32 %v1078, %v1078
        %v1085 = vsel %vm505, %v1083, 0.0
        %1086 = vadd.xlane.f32.xlu0 %v1085
        %v1087 = vpop.xlane.xlu0 %1086
        %v1088 = vsel %vm505, %v1084, 0.0
        %1089 = vadd.xlane.f32.xlu0 %v1088
        %v1090 = vpop.xlane.xlu0 %1089
        %v1091 = vmul.f32 %v1081, %v1081
        %v1092 = vmul.f32 %v1082, %v1082
        %v1093 = vsel %vm505, %v1091, 0.0
        %1094 = vadd.xlane.f32.xlu0 %v1093
        %v1095 = vpop.xlane.xlu0 %1094
        %v1096 = vsel %vm505, %v1092, 0.0
        %1097 = vadd.xlane.f32.xlu0 %v1096
        %v1098 = vpop.xlane.xlu0 %1097
        %v1099 = vadd.f32 %v1087, %v1095
        %v1100 = vadd.f32 %v1090, %v1098
        %v1101 = vmax.f32 %v1099, 1e-24
        %v1102 = vmax.f32 %v1100, 1e-24
        %v1103 = vrsqrt.pop %v1101
        %v1104 = vmul.f32 %v1103, %v1101
        %v1105 = vmul.f32 %v1104, %v1103
        %v1106 = vmul.f32 0.5, %v1105
        %v1107 = vsub.f32 1.5, %v1106
        %v1108 = vmul.f32 %v1103, %v1107
        %vm1109 = vweird.f32 %v1101
        %vm1110 = vweird.f32 %v1103
        %vm1111 = vmor %vm1109, %vm1110
        %v1112 = vsel %vm1111, %v1103, %v1108
        %v1113 = vrsqrt.pop %v1102
        %v1114 = vmul.f32 %v1113, %v1102
        %v1115 = vmul.f32 %v1114, %v1113
        %v1116 = vmul.f32 0.5, %v1115
        %v1117 = vsub.f32 1.5, %v1116
        %v1118 = vmul.f32 %v1113, %v1117
        %vm1119 = vweird.f32 %v1102
        %vm1120 = vweird.f32 %v1113
        %vm1121 = vmor %vm1119, %vm1120
        %v1122 = vsel %vm1121, %v1113, %v1118
        %v1123 = vmul.f32 %v1077, %v1112
        %v1124 = vmul.f32 %v1078, %v1122
        %v1125 = vmul.f32 %v1081, %v1112
        %v1126 = vmul.f32 %v1082, %v1122
        %1129 = vrot.lane.b32.xlu0 %v1073, 32
        %v1130 = vpop.permute.xlu0 %1129
        %1131 = vrot.lane.b32.xlu0 %v1074, 32
        %v1132 = vpop.permute.xlu0 %1131
        %1137 = vrot.lane.b32.xlu0 %v1123, 64
        %v1138 = vpop.permute.xlu0 %1137
        %1139 = vrot.lane.b32.xlu0 %v1124, 64
        %v1140 = vpop.permute.xlu0 %1139
        %1145 = vrot.lane.b32.xlu0 %v1125, 96
        %v1146 = vpop.permute.xlu0 %1145
        %1147 = vrot.lane.b32.xlu0 %v1126, 96
        %v1148 = vpop.permute.xlu0 %1147
        %v1151 = vsel %vm505, %v1071, %v1130
        %v1152 = vsel %vm505, %v1072, %v1132
        %v1153 = vsel %vm582, %v1151, %v1138
        %v1154 = vsel %vm582, %v1152, %v1140
        %vm1155 = vcmask 785408
        %v1156 = vsel %vm1155, %v1153, %v1146
        %v1157 = vsel %vm1155, %v1154, %v1148
        %1158 = vmatpush.xpose.msra.mxu0 0.0
        %1159 = vmatpush.xpose.msra.mxu0 0.0
        %1160 = vmatpush.xpose.msra.mxu0 0.0
        %1161 = vmatpush.xpose.msra.mxu0 0.0
        %1162 = vmatpush.xpose.msra.mxu0 0.0
        %1163 = vmatpush.xpose.msra.mxu0 0.0
        %1164 = vmatpush.xpose.msra.mxu0 0.0
        %1165 = vmatpush.xpose.msra.mxu0 0.0
        %1166 = vmatpush.xpose.msra.mxu0 0.0
        %1167 = vmatpush.xpose.msra.mxu0 0.0
        %1168 = vmatpush.xpose.msra.mxu0 0.0
        %1169 = vmatpush.xpose.msra.mxu0 0.0
        %1170 = vmatpush.xpose.msra.mxu0 0.0
        %1171 = vmatpush.xpose.msra.mxu0 0.0
        %1172 = vmatpush.xpose.msra.mxu0 %v1157
        %1173 = vmatpush.xpose.msra.mxu0 %v1156
        %1174 = vmatmul.f32.gmra.mxu0 %v1156
        %v1175 = vpop.f32.mrf.mxu0
        %v1176 = vadd.f32 0.0, %v1175
        %1177 = vmatmul.f32.gmra.mxu0 %v1157
        %v1178 = vpop.f32.mrf.mxu0
        %v1179 = vadd.f32 0.0, %v1178
        %1180 = vdwg.mxu0
        %v1181 = vmul.f32 %v1176, 0.5
        %v1182 = vmul.f32 %v1179, 0.5
        %v1183 = vmax.f32 %v1181, 0.0
        %v1184 = vmax.f32 %v1182, 0.0
        %v1185 = vmul.f32 %v1183, 0.8
        %v1186 = vmul.f32 %v1184, 0.8
        %v1187 = vadd.f32 %v1185, %v618
        %v1188 = vadd.f32 %v1186, %v619
        %v1189 = vmul.f32 %v620, 0.7
        %v1190 = vmul.f32 %v621, 0.7
        %v1191 = vmul.f32 %v1187, 0.3
        %v1192 = vmul.f32 %v1188, 0.3
        %v1193 = vadd.f32 %v1189, %v1191
        %v1194 = vadd.f32 %v1190, %v1192
        %1195 = vst.msk [vmem:[%s487] sm:$0xff] %vm700, %v1193
        %1196 = vst.msk [vmem:[%s487 + $0x8] sm:$0xff] %vm700, %v1194
        %v1197 = vadd.f32 %v1019, %v1021
        %v1198 = vadd.f32 %v1020, %v1022
        %v1199 = vmul.f32 %v1197, 0.5
        %v1200 = vmul.f32 %v1198, 0.5
        %1201 = vst.msk [vmem:[%s494] sm:$0xff] %vm505, %v1199
        %1202 = vst.msk [vmem:[%s494 + $0x8] sm:$0xff] %vm505, %v1200
        %s1203 = sand.u32 %s243, 1
        %s1204 = scalar_lea.sflag [#allocation4], %s1203
        %s1205 = sand.u32 %s243, 1
        %s1206 = smul.addr %s1205, 16
        %s1207 = scalar_lea.vmem [#allocation13], %s1206
        %s1208 = sand.u32 %s269, 1
        %s1209 = scalar_lea.sflag [#allocation15], %s1208
        %s1210 = sand.u32 %s269, 1
        %s1211 = smul.addr %s1210, 16
        %s1212 = scalar_lea.vmem [#allocation14], %s1211
        // Predicated region
        $region81: #{tpu_custom_call.1} parent=55 // pred_check
          %p1213 = pneg %p253
        $region82: #{tpu_custom_call.1} parent=55 // pred_check_branch
          %1215 = sbr.rel (%p1213) target = $region84
        $region83: #{tpu_custom_call.1} parent=55 // pred_region
          %1217 = vsyncadd %s1204, 0
          %s1218 = smul.addr %s36, 2
          %s1219 = smul.addr %s1218, 8
          %s1220 = scalar_lea.hbm %s9, %s1219
          %s1221 = sshll.u32 %s1207, 4
          %s1222 = int_to_ptr.vmem [resolvable:$true] %s1221
          %s1223 = sshll.u32 %s1220, 4
          %s1224 = int_to_ptr.hbm [resolvable:$true] %s1223
          %1229 = dma.vmem_to_hbm [thread:$0]  %s1222, 256, %s1224, %s1204, 128, 128, 8
        $region84: #{tpu_custom_call.1} parent=55 // pred_fallthru
          _
        // Predicated region
        $region85: #{tpu_custom_call.1} parent=55 // pred_check
          %p1230 = pneg %p279
        $region86: #{tpu_custom_call.1} parent=55 // pred_check_branch
          %1232 = sbr.rel (%p1230) target = $region88
        $region87: #{tpu_custom_call.1} parent=55 // pred_region
          %1234 = vsyncadd %s1209, 0
          %s1235 = smul.addr %s36, 2
          %s1236 = smul.addr %s1235, 8
          %s1237 = scalar_lea.hbm %s10, %s1236
          %s1238 = sshll.u32 %s1212, 4
          %s1239 = int_to_ptr.vmem [resolvable:$true] %s1238
          %s1240 = sshll.u32 %s1237, 4
          %s1241 = int_to_ptr.hbm [resolvable:$true] %s1240
          %1246 = dma.vmem_to_hbm [thread:$0]  %s1239, 256, %s1241, %s1209, 128, 128, 8
        $region88: #{tpu_custom_call.1} parent=55 // pred_fallthru
          _
      $region56: #{tpu_custom_call.1} parent=5 // pred_fallthru
        _
      %p1247 = scmp.le.s32.totalorder 2, %s31
      // Predicated region
      $region89: #{tpu_custom_call.1} parent=5 // pred_check
        %p1248 = pneg %p1247
      $region90: #{tpu_custom_call.1} parent=5 // pred_check_branch
        %1250 = sbr.rel (%p1248) target = $region92
      $region91: #{tpu_custom_call.1} parent=5 // pred_region
        %s1251 = ssub.s32 %s31, 2
        // Predicated region
        $region93: #{tpu_custom_call.1} parent=91 // pred_check
          %p1252 = pneg %p259
        $region94: #{tpu_custom_call.1} parent=91 // pred_check_branch
          %1254 = sbr.rel (%p1252) target = $region96
        $region95: #{tpu_custom_call.1} parent=91 // pred_region
          %s1255 = sand.u32 %s244, 1
          %s1256 = scalar_lea.sflag [#allocation4], %s1255
          %s1257 = sand.u32 %s244, 1
          %s1258 = smul.addr %s1257, 16
          %s1259 = scalar_lea.vmem [#allocation13], %s1258
          %1261 = dma.done %s1256, 256
        $region96: #{tpu_custom_call.1} parent=91 // pred_fallthru
          _
        // Predicated region
        $region97: #{tpu_custom_call.1} parent=91 // pred_check
          %p1262 = pneg %p285
        $region98: #{tpu_custom_call.1} parent=91 // pred_check_branch
          %1264 = sbr.rel (%p1262) target = $region100
        $region99: #{tpu_custom_call.1} parent=91 // pred_region
          %s1265 = sand.u32 %s270, 1
          %s1266 = scalar_lea.sflag [#allocation15], %s1265
          %s1267 = sand.u32 %s270, 1
          %s1268 = smul.addr %s1267, 16
          %s1269 = scalar_lea.vmem [#allocation14], %s1268
          %1271 = dma.done %s1266, 256
        $region100: #{tpu_custom_call.1} parent=91 // pred_fallthru
          _
      $region92: #{tpu_custom_call.1} parent=5 // pred_fallthru
        _
    $region6: #{tpu_custom_call.1} parent=1 // loop_footer
      %s35 = sadd.s32 1, %s31
    $region7: #{tpu_custom_call.1} parent=1 // loop_footer_branch
      %30 = sbr.rel target = $region3
    $region8: #{tpu_custom_call.1} parent=1 // loop_exit
      _
    %1272 = vsyncpa [#allocation3], 1
    %s1273 = scalar_lea.sflag [#allocation3], 1
    %1274 = vsyncpa %s1273, 1
    %1275 = vsyncpa [#allocation6], 1
    %s1276 = scalar_lea.sflag [#allocation6], 1
    %1277 = vsyncpa %s1276, 1
    %1278 = vsyncpa [#allocation9], 1
    %1279 = vsyncpa [#allocation12], 1
    %1280 = vsyncpa [#allocation4], 1
    %s1281 = scalar_lea.sflag [#allocation4], 1
    %1282 = vsyncpa %s1281, 1
    %1283 = vsyncpa [#allocation15], 1
    %s1284 = scalar_lea.sflag [#allocation15], 1
    %1285 = vsyncpa %s1284, 1

</llo_original>
